<compile_context>
chip_gen: v6e
topology: v6e:2x2x1
jax: 0.10.0
libtpu: 0.0.40
codegen_flags: <defaults>
</compile_context>

<pallas_src>
import functools

import jax
import jax.numpy as jnp
from jax import lax
from jax.experimental import pallas as pl
from jax.experimental.pallas import tpu as pltpu


def _round_up(v, m):
    return ((v + m - 1) // m) * m


def _sepconv_kernel(x_ref, dw_ref, db_ref, pw_ref, pb_ref, o_ref, norm_ref,
                    *pad_scratch, K, stride, padding, scale,
                    H, W, H_out, W_out, Cin, Cout, eps):
    """One batch element per grid step (grid=(N,), 'parallel').

    x_ref    : (1, Cin, H, W)          activation block, native dtype, NCHW
    dw_ref   : (Cmid*K*K,)   SMEM      depthwise weights, idx = (c*K + dy)*K + dx
    db_ref   : (Cmid,)       SMEM      depthwise bias
    pw_ref   : (Cout*Cmid,)  SMEM      pointwise weights, idx = co*Cmid + cm
    pb_ref   : (Cout,)       SMEM      pointwise bias
    o_ref    : (1, Cout, H_out, W_out) output block (NCHW, W on lanes)
    norm_ref : (Cmid, H_out, W_out)    f32 VMEM scratch for normalized planes
    pad_scratch: optional (Cin, H+2p, W+2p) VMEM scratch for spatial padding
    """
    Cmid = Cin * scale
    h_win = stride * (H_out - 1) + 1
    w_win = stride * (W_out - 1) + 1

    if padding > 0:
        xpad_ref = pad_scratch[0]
        Hp = H + 2 * padding
        Wp = W + 2 * padding
        # Zero the scratch then drop the valid window in.  Cheap VMEM pass that
        # replaces a full padded copy of the activation in HBM.
        xpad_ref[...] = jnp.zeros((Cin, Hp, Wp), xpad_ref.dtype)
        xpad_ref[:, pl.ds(padding, H), pl.ds(padding, W)] = x_ref[0, :, :, :]

        def load_tap(cin, dy, dx):
            t = xpad_ref[cin, pl.ds(dy, h_win), pl.ds(dx, w_win)]
            if stride > 1:
                t = lax.slice(t, (0, 0), (h_win, w_win), (stride, stride))
            return t.astype(jnp.float32)
    else:
        def load_tap(cin, dy, dx):
            t = x_ref[0, cin, pl.ds(dy, h_win), pl.ds(dx, w_win)]
            if stride > 1:
                t = lax.slice(t, (0, 0), (h_win, w_win), (stride, stride))
            return t.astype(jnp.float32)

    inv_hw = 1.0 / float(H_out * W_out)

    def _mean2d(v):  # (H_out, W_out) -> (1, 1): lane reduce, then sublane reduce
        return jnp.sum(jnp.sum(v, axis=1, keepdims=True),
                       axis=0, keepdims=True) * inv_hw

    # ---- depthwise conv + bias + InstanceNorm(affine=False): one lane-dense
    # (H_out, W_out) plane per mid channel, scalar weights from SMEM (VPU work).
    for cin in range(Cin):
        # K*K ref-sliced taps of this input channel; loaded once and reused for
        # all `scale` replicated output channels (in-kernel channel replication).
        taps = [load_tap(cin, dy, dx) for dy in range(K) for dx in range(K)]
        for s in range(scale):
            c = cin * scale + s              # grouped-conv channel order
            acc = taps[0] * dw_ref[c * K * K]
            for t in range(1, K * K):
                acc = acc + taps[t] * dw_ref[c * K * K + t]
            acc = acc + db_ref[c]
            mean = _mean2d(acc)
            cen = acc - mean
            var = _mean2d(cen * cen)         # biased variance, as in PyTorch
            norm_ref[c, :, :] = cen * lax.rsqrt(var + eps)

    # ---- pointwise 1x1 conv: per-out-channel scalar-weighted accumulation on
    # the VPU, written lane-dense straight into the NCHW output block.
    # TODO(synk): for large Cmid/Cout (>= ~64) switch to an MXU matmul path, and
    # for large H*W add spatial tiling + two-pass InstanceNorm (needed to fit
    # v7x's 64 MiB VMEM and to feed both of its TensorCores).
    for co in range(Cout):
        y = norm_ref[0, :, :] * pw_ref[co * Cmid]
        for cm in range(1, Cmid):
            y = y + norm_ref[cm, :, :] * pw_ref[co * Cmid + cm]
        y = y + pb_ref[co]
        o_ref[0, co, :, :] = y.astype(o_ref.dtype)


def separable_conv2d(x, dw_weight, dw_bias, pw_weight, pw_bias, *,
                     kernel_size, stride=1, padding=0, scale_factor=1, eps=1e-5):
    """Forward pass matching the PyTorch SeparableConv2d module (NCHW in/out).

    x         : (N, Cin, H, W)
    dw_weight : (Cin*scale_factor, 1, K, K)   (grouped conv, groups=Cin)
    dw_bias   : (Cin*scale_factor,)
    pw_weight : (Cout, Cin*scale_factor, 1, 1)
    pw_bias   : (Cout,)
    returns   : (N, Cout, H_out, W_out)
    """
    N, Cin, H, W = x.shape
    Cmid = Cin * scale_factor
    Cout = pw_weight.shape[0]
    K = kernel_size
    H_out = (H + 2 * padding - K) // stride + 1
    W_out = (W + 2 * padding - K) // stride + 1

    # Small parameters -> flat f32 tables, SMEM-resident, consumed as scalars.
    dw_flat = dw_weight.reshape(Cmid * K * K).astype(jnp.float32)  # (c*K+dy)*K+dx
    db = dw_bias.reshape(Cmid).astype(jnp.float32)
    pw_flat = pw_weight.reshape(Cout * Cmid).astype(jnp.float32)   # co*Cmid+cm
    pb = pw_bias.reshape(Cout).astype(jnp.float32)

    kernel = functools.partial(
        _sepconv_kernel, K=K, stride=stride, padding=padding, scale=scale_factor,
        H=H, W=W, H_out=H_out, W_out=W_out, Cin=Cin, Cout=Cout, eps=eps)

    scratch_shapes = [pltpu.VMEM((Cmid, H_out, W_out), jnp.float32)]
    if padding > 0:
        scratch_shapes.append(
            pltpu.VMEM((Cin, H + 2 * padding, W + 2 * padding), x.dtype))

    # Explicit VMEM budget: double-buffered I/O blocks + scratch, with headroom,
    # kept below v7x's 64 MiB physical VMEM.
    itemsize = jnp.dtype(x.dtype).itemsize

    def tiled_bytes(c, h, w, isz):
        return c * _round_up(h, 8) * _round_up(w, 128) * isz

    est = (2 * tiled_bytes(Cin, H, W, itemsize)
           + 2 * tiled_bytes(Cout, H_out, W_out, itemsize)
           + tiled_bytes(Cmid, H_out, W_out, 4))
    if padding > 0:
        est += tiled_bytes(Cin, H + 2 * padding, W + 2 * padding, itemsize)
    vmem_limit = int(min(max(4 * est, 16 * 2**20), 56 * 2**20))

    smem = pl.BlockSpec(memory_space=pltpu.MemorySpace.SMEM)

    out = pl.pallas_call(
        kernel,
        out_shape=jax.ShapeDtypeStruct((N, Cout, H_out, W_out), x.dtype),
        grid_spec=pltpu.PrefetchScalarGridSpec(
            num_scalar_prefetch=0,
            grid=(N,),
            in_specs=[
                pl.BlockSpec((1, Cin, H, W), lambda n: (n, 0, 0, 0)),
                smem,  # depthwise weights
                smem,  # depthwise bias
                smem,  # pointwise weights
                smem,  # pointwise bias
            ],
            out_specs=pl.BlockSpec((1, Cout, H_out, W_out),
                                   lambda n: (n, 0, 0, 0)),
            scratch_shapes=scratch_shapes,
        ),
        compiler_params=pltpu.CompilerParams(
            dimension_semantics=("parallel",),
            vmem_limit_bytes=vmem_limit,
        ),
    )(x, dw_flat, db, pw_flat, pb)
    return out


def _reference(x, dw_w, dw_b, pw_w, pw_b, stride, padding, groups, eps=1e-5):
    """Pure-JAX reference replicating the PyTorch module exactly (NCHW)."""
    y = lax.conv_general_dilated(
        x, dw_w, (stride, stride),
        [(padding, padding), (padding, padding)],
        dimension_numbers=("NCHW", "OIHW", "NCHW"),
        feature_group_count=groups)
    y = y + dw_b.reshape(1, -1, 1, 1)
    mean = jnp.mean(y, axis=(2, 3), keepdims=True)
    var = jnp.mean((y - mean) ** 2, axis=(2, 3), keepdims=True)
    y = (y - mean) / jnp.sqrt(var + eps)
    z = lax.conv_general_dilated(
        y, pw_w, (1, 1), [(0, 0), (0, 0)],
        dimension_numbers=("NCHW", "OIHW", "NCHW"))
    return z + pw_b.reshape(1, -1, 1, 1)


if __name__ == "__main__":
    master_key = jax.random.PRNGKey(0)

    def run_case(case_key, N, Cin, Cout, H, W, K, stride, padding, scale):
        Cmid = Cin * scale
        k1, k2, k3, k4, k5 = jax.random.split(case_key, 5)
        x = jax.random.normal(k1, (N, Cin, H, W), jnp.float32)
        dw_w = jax.random.normal(k2, (Cmid, 1, K, K), jnp.float32) * 0.2
        dw_b = jax.random.normal(k3, (Cmid,), jnp.float32) * 0.1
        pw_w = jax.random.normal(k4, (Cout, Cmid, 1, 1), jnp.float32) * 0.2
        pw_b = jax.random.normal(k5, (Cout,), jnp.float32) * 0.1

        out = separable_conv2d(x, dw_w, dw_b, pw_w, pw_b,
                               kernel_size=K, stride=stride,
                               padding=padding, scale_factor=scale)
        out = jax.block_until_ready(out)

        ref = _reference(x, dw_w, dw_b, pw_w, pw_b, stride, padding, Cin)
        assert out.shape == ref.shape, (out.shape, ref.shape)
        err = float(jnp.max(jnp.abs(out - ref)))
        assert err < 1e-4, err

    key1, key2 = jax.random.split(master_key)
    # primary config: padded 3x3 depthwise, scale_factor=1
    run_case(key1, N=2, Cin=4, Cout=8, H=16, W=16, K=3, stride=1, padding=1, scale=1)
    # secondary config: unpadded, scale_factor=2 (in-kernel channel replication)
    run_case(key2, N=1, Cin=3, Cout=6, H=12, W=12, K=3, stride=1, padding=0, scale=2)

    print("KERNEL_OK")
</pallas_src>

<mosaic_0001>
module attributes {stable_mosaic.version = 11 : i64} {
  func.func @_sepconv_kernel(%arg0: i32, %arg1: memref<1x4x16x16xf32, #tpu.memory_space<vmem>>, %arg2: memref<36xf32, #tpu.memory_space<smem>>, %arg3: memref<4xf32, #tpu.memory_space<smem>>, %arg4: memref<32xf32, #tpu.memory_space<smem>>, %arg5: memref<8xf32, #tpu.memory_space<smem>>, %arg6: memref<1x8x16x16xf32, #tpu.memory_space<vmem>>, %arg7: memref<4x16x16xf32, #tpu.memory_space<vmem>>, %arg8: memref<4x18x18xf32, #tpu.memory_space<vmem>>) attributes {dimension_semantics = [#tpu.dimension_semantics<parallel>], iteration_bounds = array<i64: 2>, scalar_prefetch = 0 : i64, scratch_operands = 2 : i64, tpu.core_type = #tpu.core_type<tc>, window_params = [{transform_indices = @transform_0, window_bounds = array<i64: 1, 4, 16, 16>}, {transform_indices = @transform_1, window_bounds = array<i64: 36>}, {transform_indices = @transform_2, window_bounds = array<i64: 4>}, {transform_indices = @transform_3, window_bounds = array<i64: 32>}, {transform_indices = @transform_4, window_bounds = array<i64: 8>}, {transform_indices = @transform_5, window_bounds = array<i64: 1, 8, 16, 16>}]} {
    %cst = arith.constant 0.000000e+00 : f32
    %0 = vector.broadcast %cst : f32 to vector<4x18x18xf32>
    %c0 = arith.constant 0 : index
    %c0_0 = arith.constant 0 : index
    %c0_1 = arith.constant 0 : index
    %1 = vector.load %arg8[%c0, %c0_0, %c0_1] : memref<4x18x18xf32, #tpu.memory_space<vmem>>, vector<4x18x18xf32>
    tpu.vector_store %arg8[%c0, %c0_0, %c0_1], %0 {strides = array<i32>} : memref<4x18x18xf32, #tpu.memory_space<vmem>>, vector<4x18x18xf32>,
    %c0_2 = arith.constant 0 : index
    %c0_3 = arith.constant 0 : index
    %c0_4 = arith.constant 0 : index
    %c0_5 = arith.constant 0 : index
    %2 = vector.load %arg1[%c0_2, %c0_3, %c0_4, %c0_5] : memref<1x4x16x16xf32, #tpu.memory_space<vmem>>, vector<1x4x16x16xf32>
    %3 = vector.shape_cast %2 : vector<1x4x16x16xf32> to vector<4x16x16xf32>
    %c0_6 = arith.constant 0 : index
    %c1 = arith.constant 1 : index
    %c1_7 = arith.constant 1 : index
    %4 = vector.load %arg8[%c0_6, %c1, %c1_7] : memref<4x18x18xf32, #tpu.memory_space<vmem>>, vector<4x16x16xf32>
    tpu.vector_store %arg8[%c0_6, %c1, %c1_7], %3 {strides = array<i32>} : memref<4x18x18xf32, #tpu.memory_space<vmem>>, vector<4x16x16xf32>,
    %c0_8 = arith.constant 0 : index
    %c0_9 = arith.constant 0 : index
    %c0_10 = arith.constant 0 : index
    %5 = vector.load %arg8[%c0_8, %c0_9, %c0_10] : memref<4x18x18xf32, #tpu.memory_space<vmem>>, vector<1x16x16xf32>
    %6 = vector.shape_cast %5 : vector<1x16x16xf32> to vector<16x16xf32>
    %c0_11 = arith.constant 0 : index
    %c0_12 = arith.constant 0 : index
    %c1_13 = arith.constant 1 : index
    %7 = vector.load %arg8[%c0_11, %c0_12, %c1_13] : memref<4x18x18xf32, #tpu.memory_space<vmem>>, vector<1x16x16xf32>
    %8 = vector.shape_cast %7 : vector<1x16x16xf32> to vector<16x16xf32>
    %c0_14 = arith.constant 0 : index
    %c0_15 = arith.constant 0 : index
    %c2 = arith.constant 2 : index
    %9 = vector.load %arg8[%c0_14, %c0_15, %c2] : memref<4x18x18xf32, #tpu.memory_space<vmem>>, vector<1x16x16xf32>
    %10 = vector.shape_cast %9 : vector<1x16x16xf32> to vector<16x16xf32>
    %c0_16 = arith.constant 0 : index
    %c1_17 = arith.constant 1 : index
    %c0_18 = arith.constant 0 : index
    %11 = vector.load %arg8[%c0_16, %c1_17, %c0_18] : memref<4x18x18xf32, #tpu.memory_space<vmem>>, vector<1x16x16xf32>
    %12 = vector.shape_cast %11 : vector<1x16x16xf32> to vector<16x16xf32>
    %c0_19 = arith.constant 0 : index
    %c1_20 = arith.constant 1 : index
    %c1_21 = arith.constant 1 : index
    %13 = vector.load %arg8[%c0_19, %c1_20, %c1_21] : memref<4x18x18xf32, #tpu.memory_space<vmem>>, vector<1x16x16xf32>
    %14 = vector.shape_cast %13 : vector<1x16x16xf32> to vector<16x16xf32>
    %c0_22 = arith.constant 0 : index
    %c1_23 = arith.constant 1 : index
    %c2_24 = arith.constant 2 : index
    %15 = vector.load %arg8[%c0_22, %c1_23, %c2_24] : memref<4x18x18xf32, #tpu.memory_space<vmem>>, vector<1x16x16xf32>
    %16 = vector.shape_cast %15 : vector<1x16x16xf32> to vector<16x16xf32>
    %c0_25 = arith.constant 0 : index
    %c2_26 = arith.constant 2 : index
    %c0_27 = arith.constant 0 : index
    %17 = vector.load %arg8[%c0_25, %c2_26, %c0_27] : memref<4x18x18xf32, #tpu.memory_space<vmem>>, vector<1x16x16xf32>
    %18 = vector.shape_cast %17 : vector<1x16x16xf32> to vector<16x16xf32>
    %c0_28 = arith.constant 0 : index
    %c2_29 = arith.constant 2 : index
    %c1_30 = arith.constant 1 : index
    %19 = vector.load %arg8[%c0_28, %c2_29, %c1_30] : memref<4x18x18xf32, #tpu.memory_space<vmem>>, vector<1x16x16xf32>
    %20 = vector.shape_cast %19 : vector<1x16x16xf32> to vector<16x16xf32>
    %c0_31 = arith.constant 0 : index
    %c2_32 = arith.constant 2 : index
    %c2_33 = arith.constant 2 : index
    %21 = vector.load %arg8[%c0_31, %c2_32, %c2_33] : memref<4x18x18xf32, #tpu.memory_space<vmem>>, vector<1x16x16xf32>
    %22 = vector.shape_cast %21 : vector<1x16x16xf32> to vector<16x16xf32>
    %c0_34 = arith.constant 0 : index
    %23 = memref.load %arg2[%c0_34] : memref<36xf32, #tpu.memory_space<smem>>
    %24 = vector.broadcast %23 : f32 to vector<16x16xf32>
    %25 = arith.mulf %6, %24 : vector<16x16xf32>
    %c1_35 = arith.constant 1 : index
    %26 = memref.load %arg2[%c1_35] : memref<36xf32, #tpu.memory_space<smem>>
    %27 = vector.broadcast %26 : f32 to vector<16x16xf32>
    %28 = arith.mulf %8, %27 : vector<16x16xf32>
    %29 = arith.addf %25, %28 : vector<16x16xf32>
    %c2_36 = arith.constant 2 : index
    %30 = memref.load %arg2[%c2_36] : memref<36xf32, #tpu.memory_space<smem>>
    %31 = vector.broadcast %30 : f32 to vector<16x16xf32>
    %32 = arith.mulf %10, %31 : vector<16x16xf32>
    %33 = arith.addf %29, %32 : vector<16x16xf32>
    %c3 = arith.constant 3 : index
    %34 = memref.load %arg2[%c3] : memref<36xf32, #tpu.memory_space<smem>>
    %35 = vector.broadcast %34 : f32 to vector<16x16xf32>
    %36 = arith.mulf %12, %35 : vector<16x16xf32>
    %37 = arith.addf %33, %36 : vector<16x16xf32>
    %c4 = arith.constant 4 : index
    %38 = memref.load %arg2[%c4] : memref<36xf32, #tpu.memory_space<smem>>
    %39 = vector.broadcast %38 : f32 to vector<16x16xf32>
    %40 = arith.mulf %14, %39 : vector<16x16xf32>
    %41 = arith.addf %37, %40 : vector<16x16xf32>
    %c5 = arith.constant 5 : index
    %42 = memref.load %arg2[%c5] : memref<36xf32, #tpu.memory_space<smem>>
    %43 = vector.broadcast %42 : f32 to vector<16x16xf32>
    %44 = arith.mulf %16, %43 : vector<16x16xf32>
    %45 = arith.addf %41, %44 : vector<16x16xf32>
    %c6 = arith.constant 6 : index
    %46 = memref.load %arg2[%c6] : memref<36xf32, #tpu.memory_space<smem>>
    %47 = vector.broadcast %46 : f32 to vector<16x16xf32>
    %48 = arith.mulf %18, %47 : vector<16x16xf32>
    %49 = arith.addf %45, %48 : vector<16x16xf32>
    %c7 = arith.constant 7 : index
    %50 = memref.load %arg2[%c7] : memref<36xf32, #tpu.memory_space<smem>>
    %51 = vector.broadcast %50 : f32 to vector<16x16xf32>
    %52 = arith.mulf %20, %51 : vector<16x16xf32>
    %53 = arith.addf %49, %52 : vector<16x16xf32>
    %c8 = arith.constant 8 : index
    %54 = memref.load %arg2[%c8] : memref<36xf32, #tpu.memory_space<smem>>
    %55 = vector.broadcast %54 : f32 to vector<16x16xf32>
    %56 = arith.mulf %22, %55 : vector<16x16xf32>
    %57 = arith.addf %53, %56 : vector<16x16xf32>
    %c0_37 = arith.constant 0 : index
    %58 = memref.load %arg3[%c0_37] : memref<4xf32, #tpu.memory_space<smem>>
    %59 = vector.broadcast %58 : f32 to vector<16x16xf32>
    %60 = arith.addf %57, %59 : vector<16x16xf32>
    %cst_38 = arith.constant dense<0.000000e+00> : vector<16xf32>
    %61 = vector.multi_reduction <add>, %60, %cst_38 [1] : vector<16x16xf32> to vector<16xf32>
    %62 = vector.shape_cast %61 : vector<16xf32> to vector<16x1xf32>
    %cst_39 = arith.constant dense<0.000000e+00> : vector<1xf32>
    %63 = vector.multi_reduction <add>, %62, %cst_39 [0] : vector<16x1xf32> to vector<1xf32>
    %64 = vector.shape_cast %63 : vector<1xf32> to vector<1x1xf32>
    %cst_40 = arith.constant 3.906250e-03 : f32
    %65 = vector.broadcast %cst_40 : f32 to vector<1x1xf32>
    %66 = arith.mulf %64, %65 : vector<1x1xf32>
    %67 = vector.broadcast %66 : vector<1x1xf32> to vector<16x16xf32>
    %68 = arith.subf %60, %67 : vector<16x16xf32>
    %69 = arith.mulf %68, %68 : vector<16x16xf32>
    %cst_41 = arith.constant dense<0.000000e+00> : vector<16xf32>
    %70 = vector.multi_reduction <add>, %69, %cst_41 [1] : vector<16x16xf32> to vector<16xf32>
    %71 = vector.shape_cast %70 : vector<16xf32> to vector<16x1xf32>
    %cst_42 = arith.constant dense<0.000000e+00> : vector<1xf32>
    %72 = vector.multi_reduction <add>, %71, %cst_42 [0] : vector<16x1xf32> to vector<1xf32>
    %73 = vector.shape_cast %72 : vector<1xf32> to vector<1x1xf32>
    %cst_43 = arith.constant 3.906250e-03 : f32
    %74 = vector.broadcast %cst_43 : f32 to vector<1x1xf32>
    %75 = arith.mulf %73, %74 : vector<1x1xf32>
    %cst_44 = arith.constant 9.99999974E-6 : f32
    %76 = vector.broadcast %cst_44 : f32 to vector<1x1xf32>
    %77 = arith.addf %75, %76 : vector<1x1xf32>
    %78 = math.rsqrt %77 : vector<1x1xf32>
    %79 = vector.broadcast %78 : vector<1x1xf32> to vector<16x16xf32>
    %80 = arith.mulf %68, %79 : vector<16x16xf32>
    %c0_45 = arith.constant 0 : index
    %c0_46 = arith.constant 0 : index
    %c0_47 = arith.constant 0 : index
    %81 = vector.load %arg7[%c0_45, %c0_46, %c0_47] : memref<4x16x16xf32, #tpu.memory_space<vmem>>, vector<1x16x16xf32>
    %82 = vector.shape_cast %81 : vector<1x16x16xf32> to vector<16x16xf32>
    %83 = vector.shape_cast %80 : vector<16x16xf32> to vector<1x16x16xf32>
    tpu.vector_store %arg7[%c0_45, %c0_46, %c0_47], %83 {strides = array<i32>} : memref<4x16x16xf32, #tpu.memory_space<vmem>>, vector<1x16x16xf32>,
    %c1_48 = arith.constant 1 : index
    %c0_49 = arith.constant 0 : index
    %c0_50 = arith.constant 0 : index
    %84 = vector.load %arg8[%c1_48, %c0_49, %c0_50] : memref<4x18x18xf32, #tpu.memory_space<vmem>>, vector<1x16x16xf32>
    %85 = vector.shape_cast %84 : vector<1x16x16xf32> to vector<16x16xf32>
    %c1_51 = arith.constant 1 : index
    %c0_52 = arith.constant 0 : index
    %c1_53 = arith.constant 1 : index
    %86 = vector.load %arg8[%c1_51, %c0_52, %c1_53] : memref<4x18x18xf32, #tpu.memory_space<vmem>>, vector<1x16x16xf32>
    %87 = vector.shape_cast %86 : vector<1x16x16xf32> to vector<16x16xf32>
    %c1_54 = arith.constant 1 : index
    %c0_55 = arith.constant 0 : index
    %c2_56 = arith.constant 2 : index
    %88 = vector.load %arg8[%c1_54, %c0_55, %c2_56] : memref<4x18x18xf32, #tpu.memory_space<vmem>>, vector<1x16x16xf32>
    %89 = vector.shape_cast %88 : vector<1x16x16xf32> to vector<16x16xf32>
    %c1_57 = arith.constant 1 : index
    %c1_58 = arith.constant 1 : index
    %c0_59 = arith.constant 0 : index
    %90 = vector.load %arg8[%c1_57, %c1_58, %c0_59] : memref<4x18x18xf32, #tpu.memory_space<vmem>>, vector<1x16x16xf32>
    %91 = vector.shape_cast %90 : vector<1x16x16xf32> to vector<16x16xf32>
    %c1_60 = arith.constant 1 : index
    %c1_61 = arith.constant 1 : index
    %c1_62 = arith.constant 1 : index
    %92 = vector.load %arg8[%c1_60, %c1_61, %c1_62] : memref<4x18x18xf32, #tpu.memory_space<vmem>>, vector<1x16x16xf32>
    %93 = vector.shape_cast %92 : vector<1x16x16xf32> to vector<16x16xf32>
    %c1_63 = arith.constant 1 : index
    %c1_64 = arith.constant 1 : index
    %c2_65 = arith.constant 2 : index
    %94 = vector.load %arg8[%c1_63, %c1_64, %c2_65] : memref<4x18x18xf32, #tpu.memory_space<vmem>>, vector<1x16x16xf32>
    %95 = vector.shape_cast %94 : vector<1x16x16xf32> to vector<16x16xf32>
    %c1_66 = arith.constant 1 : index
    %c2_67 = arith.constant 2 : index
    %c0_68 = arith.constant 0 : index
    %96 = vector.load %arg8[%c1_66, %c2_67, %c0_68] : memref<4x18x18xf32, #tpu.memory_space<vmem>>, vector<1x16x16xf32>
    %97 = vector.shape_cast %96 : vector<1x16x16xf32> to vector<16x16xf32>
    %c1_69 = arith.constant 1 : index
    %c2_70 = arith.constant 2 : index
    %c1_71 = arith.constant 1 : index
    %98 = vector.load %arg8[%c1_69, %c2_70, %c1_71] : memref<4x18x18xf32, #tpu.memory_space<vmem>>, vector<1x16x16xf32>
    %99 = vector.shape_cast %98 : vector<1x16x16xf32> to vector<16x16xf32>
    %c1_72 = arith.constant 1 : index
    %c2_73 = arith.constant 2 : index
    %c2_74 = arith.constant 2 : index
    %100 = vector.load %arg8[%c1_72, %c2_73, %c2_74] : memref<4x18x18xf32, #tpu.memory_space<vmem>>, vector<1x16x16xf32>
    %101 = vector.shape_cast %100 : vector<1x16x16xf32> to vector<16x16xf32>
    %c9 = arith.constant 9 : index
    %102 = memref.load %arg2[%c9] : memref<36xf32, #tpu.memory_space<smem>>
    %103 = vector.broadcast %102 : f32 to vector<16x16xf32>
    %104 = arith.mulf %85, %103 : vector<16x16xf32>
    %c10 = arith.constant 10 : index
    %105 = memref.load %arg2[%c10] : memref<36xf32, #tpu.memory_space<smem>>
    %106 = vector.broadcast %105 : f32 to vector<16x16xf32>
    %107 = arith.mulf %87, %106 : vector<16x16xf32>
    %108 = arith.addf %104, %107 : vector<16x16xf32>
    %c11 = arith.constant 11 : index
    %109 = memref.load %arg2[%c11] : memref<36xf32, #tpu.memory_space<smem>>
    %110 = vector.broadcast %109 : f32 to vector<16x16xf32>
    %111 = arith.mulf %89, %110 : vector<16x16xf32>
    %112 = arith.addf %108, %111 : vector<16x16xf32>
    %c12 = arith.constant 12 : index
    %113 = memref.load %arg2[%c12] : memref<36xf32, #tpu.memory_space<smem>>
    %114 = vector.broadcast %113 : f32 to vector<16x16xf32>
    %115 = arith.mulf %91, %114 : vector<16x16xf32>
    %116 = arith.addf %112, %115 : vector<16x16xf32>
    %c13 = arith.constant 13 : index
    %117 = memref.load %arg2[%c13] : memref<36xf32, #tpu.memory_space<smem>>
    %118 = vector.broadcast %117 : f32 to vector<16x16xf32>
    %119 = arith.mulf %93, %118 : vector<16x16xf32>
    %120 = arith.addf %116, %119 : vector<16x16xf32>
    %c14 = arith.constant 14 : index
    %121 = memref.load %arg2[%c14] : memref<36xf32, #tpu.memory_space<smem>>
    %122 = vector.broadcast %121 : f32 to vector<16x16xf32>
    %123 = arith.mulf %95, %122 : vector<16x16xf32>
    %124 = arith.addf %120, %123 : vector<16x16xf32>
    %c15 = arith.constant 15 : index
    %125 = memref.load %arg2[%c15] : memref<36xf32, #tpu.memory_space<smem>>
    %126 = vector.broadcast %125 : f32 to vector<16x16xf32>
    %127 = arith.mulf %97, %126 : vector<16x16xf32>
    %128 = arith.addf %124, %127 : vector<16x16xf32>
    %c16 = arith.constant 16 : index
    %129 = memref.load %arg2[%c16] : memref<36xf32, #tpu.memory_space<smem>>
    %130 = vector.broadcast %129 : f32 to vector<16x16xf32>
    %131 = arith.mulf %99, %130 : vector<16x16xf32>
    %132 = arith.addf %128, %131 : vector<16x16xf32>
    %c17 = arith.constant 17 : index
    %133 = memref.load %arg2[%c17] : memref<36xf32, #tpu.memory_space<smem>>
    %134 = vector.broadcast %133 : f32 to vector<16x16xf32>
    %135 = arith.mulf %101, %134 : vector<16x16xf32>
    %136 = arith.addf %132, %135 : vector<16x16xf32>
    %c1_75 = arith.constant 1 : index
    %137 = memref.load %arg3[%c1_75] : memref<4xf32, #tpu.memory_space<smem>>
    %138 = vector.broadcast %137 : f32 to vector<16x16xf32>
    %139 = arith.addf %136, %138 : vector<16x16xf32>
    %cst_76 = arith.constant dense<0.000000e+00> : vector<16xf32>
    %140 = vector.multi_reduction <add>, %139, %cst_76 [1] : vector<16x16xf32> to vector<16xf32>
    %141 = vector.shape_cast %140 : vector<16xf32> to vector<16x1xf32>
    %cst_77 = arith.constant dense<0.000000e+00> : vector<1xf32>
    %142 = vector.multi_reduction <add>, %141, %cst_77 [0] : vector<16x1xf32> to vector<1xf32>
    %143 = vector.shape_cast %142 : vector<1xf32> to vector<1x1xf32>
    %cst_78 = arith.constant 3.906250e-03 : f32
    %144 = vector.broadcast %cst_78 : f32 to vector<1x1xf32>
    %145 = arith.mulf %143, %144 : vector<1x1xf32>
    %146 = vector.broadcast %145 : vector<1x1xf32> to vector<16x16xf32>
    %147 = arith.subf %139, %146 : vector<16x16xf32>
    %148 = arith.mulf %147, %147 : vector<16x16xf32>
    %cst_79 = arith.constant dense<0.000000e+00> : vector<16xf32>
    %149 = vector.multi_reduction <add>, %148, %cst_79 [1] : vector<16x16xf32> to vector<16xf32>
    %150 = vector.shape_cast %149 : vector<16xf32> to vector<16x1xf32>
    %cst_80 = arith.constant dense<0.000000e+00> : vector<1xf32>
    %151 = vector.multi_reduction <add>, %150, %cst_80 [0] : vector<16x1xf32> to vector<1xf32>
    %152 = vector.shape_cast %151 : vector<1xf32> to vector<1x1xf32>
    %cst_81 = arith.constant 3.906250e-03 : f32
    %153 = vector.broadcast %cst_81 : f32 to vector<1x1xf32>
    %154 = arith.mulf %152, %153 : vector<1x1xf32>
    %cst_82 = arith.constant 9.99999974E-6 : f32
    %155 = vector.broadcast %cst_82 : f32 to vector<1x1xf32>
    %156 = arith.addf %154, %155 : vector<1x1xf32>
    %157 = math.rsqrt %156 : vector<1x1xf32>
    %158 = vector.broadcast %157 : vector<1x1xf32> to vector<16x16xf32>
    %159 = arith.mulf %147, %158 : vector<16x16xf32>
    %c1_83 = arith.constant 1 : index
    %c0_84 = arith.constant 0 : index
    %c0_85 = arith.constant 0 : index
    %160 = vector.load %arg7[%c1_83, %c0_84, %c0_85] : memref<4x16x16xf32, #tpu.memory_space<vmem>>, vector<1x16x16xf32>
    %161 = vector.shape_cast %160 : vector<1x16x16xf32> to vector<16x16xf32>
    %162 = vector.shape_cast %159 : vector<16x16xf32> to vector<1x16x16xf32>
    tpu.vector_store %arg7[%c1_83, %c0_84, %c0_85], %162 {strides = array<i32>} : memref<4x16x16xf32, #tpu.memory_space<vmem>>, vector<1x16x16xf32>,
    %c2_86 = arith.constant 2 : index
    %c0_87 = arith.constant 0 : index
    %c0_88 = arith.constant 0 : index
    %163 = vector.load %arg8[%c2_86, %c0_87, %c0_88] : memref<4x18x18xf32, #tpu.memory_space<vmem>>, vector<1x16x16xf32>
    %164 = vector.shape_cast %163 : vector<1x16x16xf32> to vector<16x16xf32>
    %c2_89 = arith.constant 2 : index
    %c0_90 = arith.constant 0 : index
    %c1_91 = arith.constant 1 : index
    %165 = vector.load %arg8[%c2_89, %c0_90, %c1_91] : memref<4x18x18xf32, #tpu.memory_space<vmem>>, vector<1x16x16xf32>
    %166 = vector.shape_cast %165 : vector<1x16x16xf32> to vector<16x16xf32>
    %c2_92 = arith.constant 2 : index
    %c0_93 = arith.constant 0 : index
    %c2_94 = arith.constant 2 : index
    %167 = vector.load %arg8[%c2_92, %c0_93, %c2_94] : memref<4x18x18xf32, #tpu.memory_space<vmem>>, vector<1x16x16xf32>
    %168 = vector.shape_cast %167 : vector<1x16x16xf32> to vector<16x16xf32>
    %c2_95 = arith.constant 2 : index
    %c1_96 = arith.constant 1 : index
    %c0_97 = arith.constant 0 : index
    %169 = vector.load %arg8[%c2_95, %c1_96, %c0_97] : memref<4x18x18xf32, #tpu.memory_space<vmem>>, vector<1x16x16xf32>
    %170 = vector.shape_cast %169 : vector<1x16x16xf32> to vector<16x16xf32>
    %c2_98 = arith.constant 2 : index
    %c1_99 = arith.constant 1 : index
    %c1_100 = arith.constant 1 : index
    %171 = vector.load %arg8[%c2_98, %c1_99, %c1_100] : memref<4x18x18xf32, #tpu.memory_space<vmem>>, vector<1x16x16xf32>
    %172 = vector.shape_cast %171 : vector<1x16x16xf32> to vector<16x16xf32>
    %c2_101 = arith.constant 2 : index
    %c1_102 = arith.constant 1 : index
    %c2_103 = arith.constant 2 : index
    %173 = vector.load %arg8[%c2_101, %c1_102, %c2_103] : memref<4x18x18xf32, #tpu.memory_space<vmem>>, vector<1x16x16xf32>
    %174 = vector.shape_cast %173 : vector<1x16x16xf32> to vector<16x16xf32>
    %c2_104 = arith.constant 2 : index
    %c2_105 = arith.constant 2 : index
    %c0_106 = arith.constant 0 : index
    %175 = vector.load %arg8[%c2_104, %c2_105, %c0_106] : memref<4x18x18xf32, #tpu.memory_space<vmem>>, vector<1x16x16xf32>
    %176 = vector.shape_cast %175 : vector<1x16x16xf32> to vector<16x16xf32>
    %c2_107 = arith.constant 2 : index
    %c2_108 = arith.constant 2 : index
    %c1_109 = arith.constant 1 : index
    %177 = vector.load %arg8[%c2_107, %c2_108, %c1_109] : memref<4x18x18xf32, #tpu.memory_space<vmem>>, vector<1x16x16xf32>
    %178 = vector.shape_cast %177 : vector<1x16x16xf32> to vector<16x16xf32>
    %c2_110 = arith.constant 2 : index
    %c2_111 = arith.constant 2 : index
    %c2_112 = arith.constant 2 : index
    %179 = vector.load %arg8[%c2_110, %c2_111, %c2_112] : memref<4x18x18xf32, #tpu.memory_space<vmem>>, vector<1x16x16xf32>
    %180 = vector.shape_cast %179 : vector<1x16x16xf32> to vector<16x16xf32>
    %c18 = arith.constant 18 : index
    %181 = memref.load %arg2[%c18] : memref<36xf32, #tpu.memory_space<smem>>
    %182 = vector.broadcast %181 : f32 to vector<16x16xf32>
    %183 = arith.mulf %164, %182 : vector<16x16xf32>
    %c19 = arith.constant 19 : index
    %184 = memref.load %arg2[%c19] : memref<36xf32, #tpu.memory_space<smem>>
    %185 = vector.broadcast %184 : f32 to vector<16x16xf32>
    %186 = arith.mulf %166, %185 : vector<16x16xf32>
    %187 = arith.addf %183, %186 : vector<16x16xf32>
    %c20 = arith.constant 20 : index
    %188 = memref.load %arg2[%c20] : memref<36xf32, #tpu.memory_space<smem>>
    %189 = vector.broadcast %188 : f32 to vector<16x16xf32>
    %190 = arith.mulf %168, %189 : vector<16x16xf32>
    %191 = arith.addf %187, %190 : vector<16x16xf32>
    %c21 = arith.constant 21 : index
    %192 = memref.load %arg2[%c21] : memref<36xf32, #tpu.memory_space<smem>>
    %193 = vector.broadcast %192 : f32 to vector<16x16xf32>
    %194 = arith.mulf %170, %193 : vector<16x16xf32>
    %195 = arith.addf %191, %194 : vector<16x16xf32>
    %c22 = arith.constant 22 : index
    %196 = memref.load %arg2[%c22] : memref<36xf32, #tpu.memory_space<smem>>
    %197 = vector.broadcast %196 : f32 to vector<16x16xf32>
    %198 = arith.mulf %172, %197 : vector<16x16xf32>
    %199 = arith.addf %195, %198 : vector<16x16xf32>
    %c23 = arith.constant 23 : index
    %200 = memref.load %arg2[%c23] : memref<36xf32, #tpu.memory_space<smem>>
    %201 = vector.broadcast %200 : f32 to vector<16x16xf32>
    %202 = arith.mulf %174, %201 : vector<16x16xf32>
    %203 = arith.addf %199, %202 : vector<16x16xf32>
    %c24 = arith.constant 24 : index
    %204 = memref.load %arg2[%c24] : memref<36xf32, #tpu.memory_space<smem>>
    %205 = vector.broadcast %204 : f32 to vector<16x16xf32>
    %206 = arith.mulf %176, %205 : vector<16x16xf32>
    %207 = arith.addf %203, %206 : vector<16x16xf32>
    %c25 = arith.constant 25 : index
    %208 = memref.load %arg2[%c25] : memref<36xf32, #tpu.memory_space<smem>>
    %209 = vector.broadcast %208 : f32 to vector<16x16xf32>
    %210 = arith.mulf %178, %209 : vector<16x16xf32>
    %211 = arith.addf %207, %210 : vector<16x16xf32>
    %c26 = arith.constant 26 : index
    %212 = memref.load %arg2[%c26] : memref<36xf32, #tpu.memory_space<smem>>
    %213 = vector.broadcast %212 : f32 to vector<16x16xf32>
    %214 = arith.mulf %180, %213 : vector<16x16xf32>
    %215 = arith.addf %211, %214 : vector<16x16xf32>
    %c2_113 = arith.constant 2 : index
    %216 = memref.load %arg3[%c2_113] : memref<4xf32, #tpu.memory_space<smem>>
    %217 = vector.broadcast %216 : f32 to vector<16x16xf32>
    %218 = arith.addf %215, %217 : vector<16x16xf32>
    %cst_114 = arith.constant dense<0.000000e+00> : vector<16xf32>
    %219 = vector.multi_reduction <add>, %218, %cst_114 [1] : vector<16x16xf32> to vector<16xf32>
    %220 = vector.shape_cast %219 : vector<16xf32> to vector<16x1xf32>
    %cst_115 = arith.constant dense<0.000000e+00> : vector<1xf32>
    %221 = vector.multi_reduction <add>, %220, %cst_115 [0] : vector<16x1xf32> to vector<1xf32>
    %222 = vector.shape_cast %221 : vector<1xf32> to vector<1x1xf32>
    %cst_116 = arith.constant 3.906250e-03 : f32
    %223 = vector.broadcast %cst_116 : f32 to vector<1x1xf32>
    %224 = arith.mulf %222, %223 : vector<1x1xf32>
    %225 = vector.broadcast %224 : vector<1x1xf32> to vector<16x16xf32>
    %226 = arith.subf %218, %225 : vector<16x16xf32>
    %227 = arith.mulf %226, %226 : vector<16x16xf32>
    %cst_117 = arith.constant dense<0.000000e+00> : vector<16xf32>
    %228 = vector.multi_reduction <add>, %227, %cst_117 [1] : vector<16x16xf32> to vector<16xf32>
    %229 = vector.shape_cast %228 : vector<16xf32> to vector<16x1xf32>
    %cst_118 = arith.constant dense<0.000000e+00> : vector<1xf32>
    %230 = vector.multi_reduction <add>, %229, %cst_118 [0] : vector<16x1xf32> to vector<1xf32>
    %231 = vector.shape_cast %230 : vector<1xf32> to vector<1x1xf32>
    %cst_119 = arith.constant 3.906250e-03 : f32
    %232 = vector.broadcast %cst_119 : f32 to vector<1x1xf32>
    %233 = arith.mulf %231, %232 : vector<1x1xf32>
    %cst_120 = arith.constant 9.99999974E-6 : f32
    %234 = vector.broadcast %cst_120 : f32 to vector<1x1xf32>
    %235 = arith.addf %233, %234 : vector<1x1xf32>
    %236 = math.rsqrt %235 : vector<1x1xf32>
    %237 = vector.broadcast %236 : vector<1x1xf32> to vector<16x16xf32>
    %238 = arith.mulf %226, %237 : vector<16x16xf32>
    %c2_121 = arith.constant 2 : index
    %c0_122 = arith.constant 0 : index
    %c0_123 = arith.constant 0 : index
    %239 = vector.load %arg7[%c2_121, %c0_122, %c0_123] : memref<4x16x16xf32, #tpu.memory_space<vmem>>, vector<1x16x16xf32>
    %240 = vector.shape_cast %239 : vector<1x16x16xf32> to vector<16x16xf32>
    %241 = vector.shape_cast %238 : vector<16x16xf32> to vector<1x16x16xf32>
    tpu.vector_store %arg7[%c2_121, %c0_122, %c0_123], %241 {strides = array<i32>} : memref<4x16x16xf32, #tpu.memory_space<vmem>>, vector<1x16x16xf32>,
    %c3_124 = arith.constant 3 : index
    %c0_125 = arith.constant 0 : index
    %c0_126 = arith.constant 0 : index
    %242 = vector.load %arg8[%c3_124, %c0_125, %c0_126] : memref<4x18x18xf32, #tpu.memory_space<vmem>>, vector<1x16x16xf32>
    %243 = vector.shape_cast %242 : vector<1x16x16xf32> to vector<16x16xf32>
    %c3_127 = arith.constant 3 : index
    %c0_128 = arith.constant 0 : index
    %c1_129 = arith.constant 1 : index
    %244 = vector.load %arg8[%c3_127, %c0_128, %c1_129] : memref<4x18x18xf32, #tpu.memory_space<vmem>>, vector<1x16x16xf32>
    %245 = vector.shape_cast %244 : vector<1x16x16xf32> to vector<16x16xf32>
    %c3_130 = arith.constant 3 : index
    %c0_131 = arith.constant 0 : index
    %c2_132 = arith.constant 2 : index
    %246 = vector.load %arg8[%c3_130, %c0_131, %c2_132] : memref<4x18x18xf32, #tpu.memory_space<vmem>>, vector<1x16x16xf32>
    %247 = vector.shape_cast %246 : vector<1x16x16xf32> to vector<16x16xf32>
    %c3_133 = arith.constant 3 : index
    %c1_134 = arith.constant 1 : index
    %c0_135 = arith.constant 0 : index
    %248 = vector.load %arg8[%c3_133, %c1_134, %c0_135] : memref<4x18x18xf32, #tpu.memory_space<vmem>>, vector<1x16x16xf32>
    %249 = vector.shape_cast %248 : vector<1x16x16xf32> to vector<16x16xf32>
    %c3_136 = arith.constant 3 : index
    %c1_137 = arith.constant 1 : index
    %c1_138 = arith.constant 1 : index
    %250 = vector.load %arg8[%c3_136, %c1_137, %c1_138] : memref<4x18x18xf32, #tpu.memory_space<vmem>>, vector<1x16x16xf32>
    %251 = vector.shape_cast %250 : vector<1x16x16xf32> to vector<16x16xf32>
    %c3_139 = arith.constant 3 : index
    %c1_140 = arith.constant 1 : index
    %c2_141 = arith.constant 2 : index
    %252 = vector.load %arg8[%c3_139, %c1_140, %c2_141] : memref<4x18x18xf32, #tpu.memory_space<vmem>>, vector<1x16x16xf32>
    %253 = vector.shape_cast %252 : vector<1x16x16xf32> to vector<16x16xf32>
    %c3_142 = arith.constant 3 : index
    %c2_143 = arith.constant 2 : index
    %c0_144 = arith.constant 0 : index
    %254 = vector.load %arg8[%c3_142, %c2_143, %c0_144] : memref<4x18x18xf32, #tpu.memory_space<vmem>>, vector<1x16x16xf32>
    %255 = vector.shape_cast %254 : vector<1x16x16xf32> to vector<16x16xf32>
    %c3_145 = arith.constant 3 : index
    %c2_146 = arith.constant 2 : index
    %c1_147 = arith.constant 1 : index
    %256 = vector.load %arg8[%c3_145, %c2_146, %c1_147] : memref<4x18x18xf32, #tpu.memory_space<vmem>>, vector<1x16x16xf32>
    %257 = vector.shape_cast %256 : vector<1x16x16xf32> to vector<16x16xf32>
    %c3_148 = arith.constant 3 : index
    %c2_149 = arith.constant 2 : index
    %c2_150 = arith.constant 2 : index
    %258 = vector.load %arg8[%c3_148, %c2_149, %c2_150] : memref<4x18x18xf32, #tpu.memory_space<vmem>>, vector<1x16x16xf32>
    %259 = vector.shape_cast %258 : vector<1x16x16xf32> to vector<16x16xf32>
    %c27 = arith.constant 27 : index
    %260 = memref.load %arg2[%c27] : memref<36xf32, #tpu.memory_space<smem>>
    %261 = vector.broadcast %260 : f32 to vector<16x16xf32>
    %262 = arith.mulf %243, %261 : vector<16x16xf32>
    %c28 = arith.constant 28 : index
    %263 = memref.load %arg2[%c28] : memref<36xf32, #tpu.memory_space<smem>>
    %264 = vector.broadcast %263 : f32 to vector<16x16xf32>
    %265 = arith.mulf %245, %264 : vector<16x16xf32>
    %266 = arith.addf %262, %265 : vector<16x16xf32>
    %c29 = arith.constant 29 : index
    %267 = memref.load %arg2[%c29] : memref<36xf32, #tpu.memory_space<smem>>
    %268 = vector.broadcast %267 : f32 to vector<16x16xf32>
    %269 = arith.mulf %247, %268 : vector<16x16xf32>
    %270 = arith.addf %266, %269 : vector<16x16xf32>
    %c30 = arith.constant 30 : index
    %271 = memref.load %arg2[%c30] : memref<36xf32, #tpu.memory_space<smem>>
    %272 = vector.broadcast %271 : f32 to vector<16x16xf32>
    %273 = arith.mulf %249, %272 : vector<16x16xf32>
    %274 = arith.addf %270, %273 : vector<16x16xf32>
    %c31 = arith.constant 31 : index
    %275 = memref.load %arg2[%c31] : memref<36xf32, #tpu.memory_space<smem>>
    %276 = vector.broadcast %275 : f32 to vector<16x16xf32>
    %277 = arith.mulf %251, %276 : vector<16x16xf32>
    %278 = arith.addf %274, %277 : vector<16x16xf32>
    %c32 = arith.constant 32 : index
    %279 = memref.load %arg2[%c32] : memref<36xf32, #tpu.memory_space<smem>>
    %280 = vector.broadcast %279 : f32 to vector<16x16xf32>
    %281 = arith.mulf %253, %280 : vector<16x16xf32>
    %282 = arith.addf %278, %281 : vector<16x16xf32>
    %c33 = arith.constant 33 : index
    %283 = memref.load %arg2[%c33] : memref<36xf32, #tpu.memory_space<smem>>
    %284 = vector.broadcast %283 : f32 to vector<16x16xf32>
    %285 = arith.mulf %255, %284 : vector<16x16xf32>
    %286 = arith.addf %282, %285 : vector<16x16xf32>
    %c34 = arith.constant 34 : index
    %287 = memref.load %arg2[%c34] : memref<36xf32, #tpu.memory_space<smem>>
    %288 = vector.broadcast %287 : f32 to vector<16x16xf32>
    %289 = arith.mulf %257, %288 : vector<16x16xf32>
    %290 = arith.addf %286, %289 : vector<16x16xf32>
    %c35 = arith.constant 35 : index
    %291 = memref.load %arg2[%c35] : memref<36xf32, #tpu.memory_space<smem>>
    %292 = vector.broadcast %291 : f32 to vector<16x16xf32>
    %293 = arith.mulf %259, %292 : vector<16x16xf32>
    %294 = arith.addf %290, %293 : vector<16x16xf32>
    %c3_151 = arith.constant 3 : index
    %295 = memref.load %arg3[%c3_151] : memref<4xf32, #tpu.memory_space<smem>>
    %296 = vector.broadcast %295 : f32 to vector<16x16xf32>
    %297 = arith.addf %294, %296 : vector<16x16xf32>
    %cst_152 = arith.constant dense<0.000000e+00> : vector<16xf32>
    %298 = vector.multi_reduction <add>, %297, %cst_152 [1] : vector<16x16xf32> to vector<16xf32>
    %299 = vector.shape_cast %298 : vector<16xf32> to vector<16x1xf32>
    %cst_153 = arith.constant dense<0.000000e+00> : vector<1xf32>
    %300 = vector.multi_reduction <add>, %299, %cst_153 [0] : vector<16x1xf32> to vector<1xf32>
    %301 = vector.shape_cast %300 : vector<1xf32> to vector<1x1xf32>
    %cst_154 = arith.constant 3.906250e-03 : f32
    %302 = vector.broadcast %cst_154 : f32 to vector<1x1xf32>
    %303 = arith.mulf %301, %302 : vector<1x1xf32>
    %304 = vector.broadcast %303 : vector<1x1xf32> to vector<16x16xf32>
    %305 = arith.subf %297, %304 : vector<16x16xf32>
    %306 = arith.mulf %305, %305 : vector<16x16xf32>
    %cst_155 = arith.constant dense<0.000000e+00> : vector<16xf32>
    %307 = vector.multi_reduction <add>, %306, %cst_155 [1] : vector<16x16xf32> to vector<16xf32>
    %308 = vector.shape_cast %307 : vector<16xf32> to vector<16x1xf32>
    %cst_156 = arith.constant dense<0.000000e+00> : vector<1xf32>
    %309 = vector.multi_reduction <add>, %308, %cst_156 [0] : vector<16x1xf32> to vector<1xf32>
    %310 = vector.shape_cast %309 : vector<1xf32> to vector<1x1xf32>
    %cst_157 = arith.constant 3.906250e-03 : f32
    %311 = vector.broadcast %cst_157 : f32 to vector<1x1xf32>
    %312 = arith.mulf %310, %311 : vector<1x1xf32>
    %cst_158 = arith.constant 9.99999974E-6 : f32
    %313 = vector.broadcast %cst_158 : f32 to vector<1x1xf32>
    %314 = arith.addf %312, %313 : vector<1x1xf32>
    %315 = math.rsqrt %314 : vector<1x1xf32>
    %316 = vector.broadcast %315 : vector<1x1xf32> to vector<16x16xf32>
    %317 = arith.mulf %305, %316 : vector<16x16xf32>
    %c3_159 = arith.constant 3 : index
    %c0_160 = arith.constant 0 : index
    %c0_161 = arith.constant 0 : index
    %318 = vector.load %arg7[%c3_159, %c0_160, %c0_161] : memref<4x16x16xf32, #tpu.memory_space<vmem>>, vector<1x16x16xf32>
    %319 = vector.shape_cast %318 : vector<1x16x16xf32> to vector<16x16xf32>
    %320 = vector.shape_cast %317 : vector<16x16xf32> to vector<1x16x16xf32>
    tpu.vector_store %arg7[%c3_159, %c0_160, %c0_161], %320 {strides = array<i32>} : memref<4x16x16xf32, #tpu.memory_space<vmem>>, vector<1x16x16xf32>,
    %c0_162 = arith.constant 0 : index
    %c0_163 = arith.constant 0 : index
    %c0_164 = arith.constant 0 : index
    %321 = vector.load %arg7[%c0_162, %c0_163, %c0_164] : memref<4x16x16xf32, #tpu.memory_space<vmem>>, vector<1x16x16xf32>
    %322 = vector.shape_cast %321 : vector<1x16x16xf32> to vector<16x16xf32>
    %c0_165 = arith.constant 0 : index
    %323 = memref.load %arg4[%c0_165] : memref<32xf32, #tpu.memory_space<smem>>
    %324 = vector.broadcast %323 : f32 to vector<16x16xf32>
    %325 = arith.mulf %322, %324 : vector<16x16xf32>
    %c1_166 = arith.constant 1 : index
    %c0_167 = arith.constant 0 : index
    %c0_168 = arith.constant 0 : index
    %326 = vector.load %arg7[%c1_166, %c0_167, %c0_168] : memref<4x16x16xf32, #tpu.memory_space<vmem>>, vector<1x16x16xf32>
    %327 = vector.shape_cast %326 : vector<1x16x16xf32> to vector<16x16xf32>
    %c1_169 = arith.constant 1 : index
    %328 = memref.load %arg4[%c1_169] : memref<32xf32, #tpu.memory_space<smem>>
    %329 = vector.broadcast %328 : f32 to vector<16x16xf32>
    %330 = arith.mulf %327, %329 : vector<16x16xf32>
    %331 = arith.addf %325, %330 : vector<16x16xf32>
    %c2_170 = arith.constant 2 : index
    %c0_171 = arith.constant 0 : index
    %c0_172 = arith.constant 0 : index
    %332 = vector.load %arg7[%c2_170, %c0_171, %c0_172] : memref<4x16x16xf32, #tpu.memory_space<vmem>>, vector<1x16x16xf32>
    %333 = vector.shape_cast %332 : vector<1x16x16xf32> to vector<16x16xf32>
    %c2_173 = arith.constant 2 : index
    %334 = memref.load %arg4[%c2_173] : memref<32xf32, #tpu.memory_space<smem>>
    %335 = vector.broadcast %334 : f32 to vector<16x16xf32>
    %336 = arith.mulf %333, %335 : vector<16x16xf32>
    %337 = arith.addf %331, %336 : vector<16x16xf32>
    %c3_174 = arith.constant 3 : index
    %c0_175 = arith.constant 0 : index
    %c0_176 = arith.constant 0 : index
    %338 = vector.load %arg7[%c3_174, %c0_175, %c0_176] : memref<4x16x16xf32, #tpu.memory_space<vmem>>, vector<1x16x16xf32>
    %339 = vector.shape_cast %338 : vector<1x16x16xf32> to vector<16x16xf32>
    %c3_177 = arith.constant 3 : index
    %340 = memref.load %arg4[%c3_177] : memref<32xf32, #tpu.memory_space<smem>>
    %341 = vector.broadcast %340 : f32 to vector<16x16xf32>
    %342 = arith.mulf %339, %341 : vector<16x16xf32>
    %343 = arith.addf %337, %342 : vector<16x16xf32>
    %c0_178 = arith.constant 0 : index
    %344 = memref.load %arg5[%c0_178] : memref<8xf32, #tpu.memory_space<smem>>
    %345 = vector.broadcast %344 : f32 to vector<16x16xf32>
    %346 = arith.addf %343, %345 : vector<16x16xf32>
    %c0_179 = arith.constant 0 : index
    %c0_180 = arith.constant 0 : index
    %c0_181 = arith.constant 0 : index
    %c0_182 = arith.constant 0 : index
    %347 = vector.load %arg6[%c0_179, %c0_180, %c0_181, %c0_182] : memref<1x8x16x16xf32, #tpu.memory_space<vmem>>, vector<1x1x16x16xf32>
    %348 = vector.shape_cast %347 : vector<1x1x16x16xf32> to vector<16x16xf32>
    %349 = vector.shape_cast %346 : vector<16x16xf32> to vector<1x1x16x16xf32>
    tpu.vector_store %arg6[%c0_179, %c0_180, %c0_181, %c0_182], %349 {strides = array<i32>} : memref<1x8x16x16xf32, #tpu.memory_space<vmem>>, vector<1x1x16x16xf32>,
    %c0_183 = arith.constant 0 : index
    %c0_184 = arith.constant 0 : index
    %c0_185 = arith.constant 0 : index
    %350 = vector.load %arg7[%c0_183, %c0_184, %c0_185] : memref<4x16x16xf32, #tpu.memory_space<vmem>>, vector<1x16x16xf32>
    %351 = vector.shape_cast %350 : vector<1x16x16xf32> to vector<16x16xf32>
    %c4_186 = arith.constant 4 : index
    %352 = memref.load %arg4[%c4_186] : memref<32xf32, #tpu.memory_space<smem>>
    %353 = vector.broadcast %352 : f32 to vector<16x16xf32>
    %354 = arith.mulf %351, %353 : vector<16x16xf32>
    %c1_187 = arith.constant 1 : index
    %c0_188 = arith.constant 0 : index
    %c0_189 = arith.constant 0 : index
    %355 = vector.load %arg7[%c1_187, %c0_188, %c0_189] : memref<4x16x16xf32, #tpu.memory_space<vmem>>, vector<1x16x16xf32>
    %356 = vector.shape_cast %355 : vector<1x16x16xf32> to vector<16x16xf32>
    %c5_190 = arith.constant 5 : index
    %357 = memref.load %arg4[%c5_190] : memref<32xf32, #tpu.memory_space<smem>>
    %358 = vector.broadcast %357 : f32 to vector<16x16xf32>
    %359 = arith.mulf %356, %358 : vector<16x16xf32>
    %360 = arith.addf %354, %359 : vector<16x16xf32>
    %c2_191 = arith.constant 2 : index
    %c0_192 = arith.constant 0 : index
    %c0_193 = arith.constant 0 : index
    %361 = vector.load %arg7[%c2_191, %c0_192, %c0_193] : memref<4x16x16xf32, #tpu.memory_space<vmem>>, vector<1x16x16xf32>
    %362 = vector.shape_cast %361 : vector<1x16x16xf32> to vector<16x16xf32>
    %c6_194 = arith.constant 6 : index
    %363 = memref.load %arg4[%c6_194] : memref<32xf32, #tpu.memory_space<smem>>
    %364 = vector.broadcast %363 : f32 to vector<16x16xf32>
    %365 = arith.mulf %362, %364 : vector<16x16xf32>
    %366 = arith.addf %360, %365 : vector<16x16xf32>
    %c3_195 = arith.constant 3 : index
    %c0_196 = arith.constant 0 : index
    %c0_197 = arith.constant 0 : index
    %367 = vector.load %arg7[%c3_195, %c0_196, %c0_197] : memref<4x16x16xf32, #tpu.memory_space<vmem>>, vector<1x16x16xf32>
    %368 = vector.shape_cast %367 : vector<1x16x16xf32> to vector<16x16xf32>
    %c7_198 = arith.constant 7 : index
    %369 = memref.load %arg4[%c7_198] : memref<32xf32, #tpu.memory_space<smem>>
    %370 = vector.broadcast %369 : f32 to vector<16x16xf32>
    %371 = arith.mulf %368, %370 : vector<16x16xf32>
    %372 = arith.addf %366, %371 : vector<16x16xf32>
    %c1_199 = arith.constant 1 : index
    %373 = memref.load %arg5[%c1_199] : memref<8xf32, #tpu.memory_space<smem>>
    %374 = vector.broadcast %373 : f32 to vector<16x16xf32>
    %375 = arith.addf %372, %374 : vector<16x16xf32>
    %c0_200 = arith.constant 0 : index
    %c1_201 = arith.constant 1 : index
    %c0_202 = arith.constant 0 : index
    %c0_203 = arith.constant 0 : index
    %376 = vector.load %arg6[%c0_200, %c1_201, %c0_202, %c0_203] : memref<1x8x16x16xf32, #tpu.memory_space<vmem>>, vector<1x1x16x16xf32>
    %377 = vector.shape_cast %376 : vector<1x1x16x16xf32> to vector<16x16xf32>
    %378 = vector.shape_cast %375 : vector<16x16xf32> to vector<1x1x16x16xf32>
    tpu.vector_store %arg6[%c0_200, %c1_201, %c0_202, %c0_203], %378 {strides = array<i32>} : memref<1x8x16x16xf32, #tpu.memory_space<vmem>>, vector<1x1x16x16xf32>,
    %c0_204 = arith.constant 0 : index
    %c0_205 = arith.constant 0 : index
    %c0_206 = arith.constant 0 : index
    %379 = vector.load %arg7[%c0_204, %c0_205, %c0_206] : memref<4x16x16xf32, #tpu.memory_space<vmem>>, vector<1x16x16xf32>
    %380 = vector.shape_cast %379 : vector<1x16x16xf32> to vector<16x16xf32>
    %c8_207 = arith.constant 8 : index
    %381 = memref.load %arg4[%c8_207] : memref<32xf32, #tpu.memory_space<smem>>
    %382 = vector.broadcast %381 : f32 to vector<16x16xf32>
    %383 = arith.mulf %380, %382 : vector<16x16xf32>
    %c1_208 = arith.constant 1 : index
    %c0_209 = arith.constant 0 : index
    %c0_210 = arith.constant 0 : index
    %384 = vector.load %arg7[%c1_208, %c0_209, %c0_210] : memref<4x16x16xf32, #tpu.memory_space<vmem>>, vector<1x16x16xf32>
    %385 = vector.shape_cast %384 : vector<1x16x16xf32> to vector<16x16xf32>
    %c9_211 = arith.constant 9 : index
    %386 = memref.load %arg4[%c9_211] : memref<32xf32, #tpu.memory_space<smem>>
    %387 = vector.broadcast %386 : f32 to vector<16x16xf32>
    %388 = arith.mulf %385, %387 : vector<16x16xf32>
    %389 = arith.addf %383, %388 : vector<16x16xf32>
    %c2_212 = arith.constant 2 : index
    %c0_213 = arith.constant 0 : index
    %c0_214 = arith.constant 0 : index
    %390 = vector.load %arg7[%c2_212, %c0_213, %c0_214] : memref<4x16x16xf32, #tpu.memory_space<vmem>>, vector<1x16x16xf32>
    %391 = vector.shape_cast %390 : vector<1x16x16xf32> to vector<16x16xf32>
    %c10_215 = arith.constant 10 : index
    %392 = memref.load %arg4[%c10_215] : memref<32xf32, #tpu.memory_space<smem>>
    %393 = vector.broadcast %392 : f32 to vector<16x16xf32>
    %394 = arith.mulf %391, %393 : vector<16x16xf32>
    %395 = arith.addf %389, %394 : vector<16x16xf32>
    %c3_216 = arith.constant 3 : index
    %c0_217 = arith.constant 0 : index
    %c0_218 = arith.constant 0 : index
    %396 = vector.load %arg7[%c3_216, %c0_217, %c0_218] : memref<4x16x16xf32, #tpu.memory_space<vmem>>, vector<1x16x16xf32>
    %397 = vector.shape_cast %396 : vector<1x16x16xf32> to vector<16x16xf32>
    %c11_219 = arith.constant 11 : index
    %398 = memref.load %arg4[%c11_219] : memref<32xf32, #tpu.memory_space<smem>>
    %399 = vector.broadcast %398 : f32 to vector<16x16xf32>
    %400 = arith.mulf %397, %399 : vector<16x16xf32>
    %401 = arith.addf %395, %400 : vector<16x16xf32>
    %c2_220 = arith.constant 2 : index
    %402 = memref.load %arg5[%c2_220] : memref<8xf32, #tpu.memory_space<smem>>
    %403 = vector.broadcast %402 : f32 to vector<16x16xf32>
    %404 = arith.addf %401, %403 : vector<16x16xf32>
    %c0_221 = arith.constant 0 : index
    %c2_222 = arith.constant 2 : index
    %c0_223 = arith.constant 0 : index
    %c0_224 = arith.constant 0 : index
    %405 = vector.load %arg6[%c0_221, %c2_222, %c0_223, %c0_224] : memref<1x8x16x16xf32, #tpu.memory_space<vmem>>, vector<1x1x16x16xf32>
    %406 = vector.shape_cast %405 : vector<1x1x16x16xf32> to vector<16x16xf32>
    %407 = vector.shape_cast %404 : vector<16x16xf32> to vector<1x1x16x16xf32>
    tpu.vector_store %arg6[%c0_221, %c2_222, %c0_223, %c0_224], %407 {strides = array<i32>} : memref<1x8x16x16xf32, #tpu.memory_space<vmem>>, vector<1x1x16x16xf32>,
    %c0_225 = arith.constant 0 : index
    %c0_226 = arith.constant 0 : index
    %c0_227 = arith.constant 0 : index
    %408 = vector.load %arg7[%c0_225, %c0_226, %c0_227] : memref<4x16x16xf32, #tpu.memory_space<vmem>>, vector<1x16x16xf32>
    %409 = vector.shape_cast %408 : vector<1x16x16xf32> to vector<16x16xf32>
    %c12_228 = arith.constant 12 : index
    %410 = memref.load %arg4[%c12_228] : memref<32xf32, #tpu.memory_space<smem>>
    %411 = vector.broadcast %410 : f32 to vector<16x16xf32>
    %412 = arith.mulf %409, %411 : vector<16x16xf32>
    %c1_229 = arith.constant 1 : index
    %c0_230 = arith.constant 0 : index
    %c0_231 = arith.constant 0 : index
    %413 = vector.load %arg7[%c1_229, %c0_230, %c0_231] : memref<4x16x16xf32, #tpu.memory_space<vmem>>, vector<1x16x16xf32>
    %414 = vector.shape_cast %413 : vector<1x16x16xf32> to vector<16x16xf32>
    %c13_232 = arith.constant 13 : index
    %415 = memref.load %arg4[%c13_232] : memref<32xf32, #tpu.memory_space<smem>>
    %416 = vector.broadcast %415 : f32 to vector<16x16xf32>
    %417 = arith.mulf %414, %416 : vector<16x16xf32>
    %418 = arith.addf %412, %417 : vector<16x16xf32>
    %c2_233 = arith.constant 2 : index
    %c0_234 = arith.constant 0 : index
    %c0_235 = arith.constant 0 : index
    %419 = vector.load %arg7[%c2_233, %c0_234, %c0_235] : memref<4x16x16xf32, #tpu.memory_space<vmem>>, vector<1x16x16xf32>
    %420 = vector.shape_cast %419 : vector<1x16x16xf32> to vector<16x16xf32>
    %c14_236 = arith.constant 14 : index
    %421 = memref.load %arg4[%c14_236] : memref<32xf32, #tpu.memory_space<smem>>
    %422 = vector.broadcast %421 : f32 to vector<16x16xf32>
    %423 = arith.mulf %420, %422 : vector<16x16xf32>
    %424 = arith.addf %418, %423 : vector<16x16xf32>
    %c3_237 = arith.constant 3 : index
    %c0_238 = arith.constant 0 : index
    %c0_239 = arith.constant 0 : index
    %425 = vector.load %arg7[%c3_237, %c0_238, %c0_239] : memref<4x16x16xf32, #tpu.memory_space<vmem>>, vector<1x16x16xf32>
    %426 = vector.shape_cast %425 : vector<1x16x16xf32> to vector<16x16xf32>
    %c15_240 = arith.constant 15 : index
    %427 = memref.load %arg4[%c15_240] : memref<32xf32, #tpu.memory_space<smem>>
    %428 = vector.broadcast %427 : f32 to vector<16x16xf32>
    %429 = arith.mulf %426, %428 : vector<16x16xf32>
    %430 = arith.addf %424, %429 : vector<16x16xf32>
    %c3_241 = arith.constant 3 : index
    %431 = memref.load %arg5[%c3_241] : memref<8xf32, #tpu.memory_space<smem>>
    %432 = vector.broadcast %431 : f32 to vector<16x16xf32>
    %433 = arith.addf %430, %432 : vector<16x16xf32>
    %c0_242 = arith.constant 0 : index
    %c3_243 = arith.constant 3 : index
    %c0_244 = arith.constant 0 : index
    %c0_245 = arith.constant 0 : index
    %434 = vector.load %arg6[%c0_242, %c3_243, %c0_244, %c0_245] : memref<1x8x16x16xf32, #tpu.memory_space<vmem>>, vector<1x1x16x16xf32>
    %435 = vector.shape_cast %434 : vector<1x1x16x16xf32> to vector<16x16xf32>
    %436 = vector.shape_cast %433 : vector<16x16xf32> to vector<1x1x16x16xf32>
    tpu.vector_store %arg6[%c0_242, %c3_243, %c0_244, %c0_245], %436 {strides = array<i32>} : memref<1x8x16x16xf32, #tpu.memory_space<vmem>>, vector<1x1x16x16xf32>,
    %c0_246 = arith.constant 0 : index
    %c0_247 = arith.constant 0 : index
    %c0_248 = arith.constant 0 : index
    %437 = vector.load %arg7[%c0_246, %c0_247, %c0_248] : memref<4x16x16xf32, #tpu.memory_space<vmem>>, vector<1x16x16xf32>
    %438 = vector.shape_cast %437 : vector<1x16x16xf32> to vector<16x16xf32>
    %c16_249 = arith.constant 16 : index
    %439 = memref.load %arg4[%c16_249] : memref<32xf32, #tpu.memory_space<smem>>
    %440 = vector.broadcast %439 : f32 to vector<16x16xf32>
    %441 = arith.mulf %438, %440 : vector<16x16xf32>
    %c1_250 = arith.constant 1 : index
    %c0_251 = arith.constant 0 : index
    %c0_252 = arith.constant 0 : index
    %442 = vector.load %arg7[%c1_250, %c0_251, %c0_252] : memref<4x16x16xf32, #tpu.memory_space<vmem>>, vector<1x16x16xf32>
    %443 = vector.shape_cast %442 : vector<1x16x16xf32> to vector<16x16xf32>
    %c17_253 = arith.constant 17 : index
    %444 = memref.load %arg4[%c17_253] : memref<32xf32, #tpu.memory_space<smem>>
    %445 = vector.broadcast %444 : f32 to vector<16x16xf32>
    %446 = arith.mulf %443, %445 : vector<16x16xf32>
    %447 = arith.addf %441, %446 : vector<16x16xf32>
    %c2_254 = arith.constant 2 : index
    %c0_255 = arith.constant 0 : index
    %c0_256 = arith.constant 0 : index
    %448 = vector.load %arg7[%c2_254, %c0_255, %c0_256] : memref<4x16x16xf32, #tpu.memory_space<vmem>>, vector<1x16x16xf32>
    %449 = vector.shape_cast %448 : vector<1x16x16xf32> to vector<16x16xf32>
    %c18_257 = arith.constant 18 : index
    %450 = memref.load %arg4[%c18_257] : memref<32xf32, #tpu.memory_space<smem>>
    %451 = vector.broadcast %450 : f32 to vector<16x16xf32>
    %452 = arith.mulf %449, %451 : vector<16x16xf32>
    %453 = arith.addf %447, %452 : vector<16x16xf32>
    %c3_258 = arith.constant 3 : index
    %c0_259 = arith.constant 0 : index
    %c0_260 = arith.constant 0 : index
    %454 = vector.load %arg7[%c3_258, %c0_259, %c0_260] : memref<4x16x16xf32, #tpu.memory_space<vmem>>, vector<1x16x16xf32>
    %455 = vector.shape_cast %454 : vector<1x16x16xf32> to vector<16x16xf32>
    %c19_261 = arith.constant 19 : index
    %456 = memref.load %arg4[%c19_261] : memref<32xf32, #tpu.memory_space<smem>>
    %457 = vector.broadcast %456 : f32 to vector<16x16xf32>
    %458 = arith.mulf %455, %457 : vector<16x16xf32>
    %459 = arith.addf %453, %458 : vector<16x16xf32>
    %c4_262 = arith.constant 4 : index
    %460 = memref.load %arg5[%c4_262] : memref<8xf32, #tpu.memory_space<smem>>
    %461 = vector.broadcast %460 : f32 to vector<16x16xf32>
    %462 = arith.addf %459, %461 : vector<16x16xf32>
    %c0_263 = arith.constant 0 : index
    %c4_264 = arith.constant 4 : index
    %c0_265 = arith.constant 0 : index
    %c0_266 = arith.constant 0 : index
    %463 = vector.load %arg6[%c0_263, %c4_264, %c0_265, %c0_266] : memref<1x8x16x16xf32, #tpu.memory_space<vmem>>, vector<1x1x16x16xf32>
    %464 = vector.shape_cast %463 : vector<1x1x16x16xf32> to vector<16x16xf32>
    %465 = vector.shape_cast %462 : vector<16x16xf32> to vector<1x1x16x16xf32>
    tpu.vector_store %arg6[%c0_263, %c4_264, %c0_265, %c0_266], %465 {strides = array<i32>} : memref<1x8x16x16xf32, #tpu.memory_space<vmem>>, vector<1x1x16x16xf32>,
    %c0_267 = arith.constant 0 : index
    %c0_268 = arith.constant 0 : index
    %c0_269 = arith.constant 0 : index
    %466 = vector.load %arg7[%c0_267, %c0_268, %c0_269] : memref<4x16x16xf32, #tpu.memory_space<vmem>>, vector<1x16x16xf32>
    %467 = vector.shape_cast %466 : vector<1x16x16xf32> to vector<16x16xf32>
    %c20_270 = arith.constant 20 : index
    %468 = memref.load %arg4[%c20_270] : memref<32xf32, #tpu.memory_space<smem>>
    %469 = vector.broadcast %468 : f32 to vector<16x16xf32>
    %470 = arith.mulf %467, %469 : vector<16x16xf32>
    %c1_271 = arith.constant 1 : index
    %c0_272 = arith.constant 0 : index
    %c0_273 = arith.constant 0 : index
    %471 = vector.load %arg7[%c1_271, %c0_272, %c0_273] : memref<4x16x16xf32, #tpu.memory_space<vmem>>, vector<1x16x16xf32>
    %472 = vector.shape_cast %471 : vector<1x16x16xf32> to vector<16x16xf32>
    %c21_274 = arith.constant 21 : index
    %473 = memref.load %arg4[%c21_274] : memref<32xf32, #tpu.memory_space<smem>>
    %474 = vector.broadcast %473 : f32 to vector<16x16xf32>
    %475 = arith.mulf %472, %474 : vector<16x16xf32>
    %476 = arith.addf %470, %475 : vector<16x16xf32>
    %c2_275 = arith.constant 2 : index
    %c0_276 = arith.constant 0 : index
    %c0_277 = arith.constant 0 : index
    %477 = vector.load %arg7[%c2_275, %c0_276, %c0_277] : memref<4x16x16xf32, #tpu.memory_space<vmem>>, vector<1x16x16xf32>
    %478 = vector.shape_cast %477 : vector<1x16x16xf32> to vector<16x16xf32>
    %c22_278 = arith.constant 22 : index
    %479 = memref.load %arg4[%c22_278] : memref<32xf32, #tpu.memory_space<smem>>
    %480 = vector.broadcast %479 : f32 to vector<16x16xf32>
    %481 = arith.mulf %478, %480 : vector<16x16xf32>
    %482 = arith.addf %476, %481 : vector<16x16xf32>
    %c3_279 = arith.constant 3 : index
    %c0_280 = arith.constant 0 : index
    %c0_281 = arith.constant 0 : index
    %483 = vector.load %arg7[%c3_279, %c0_280, %c0_281] : memref<4x16x16xf32, #tpu.memory_space<vmem>>, vector<1x16x16xf32>
    %484 = vector.shape_cast %483 : vector<1x16x16xf32> to vector<16x16xf32>
    %c23_282 = arith.constant 23 : index
    %485 = memref.load %arg4[%c23_282] : memref<32xf32, #tpu.memory_space<smem>>
    %486 = vector.broadcast %485 : f32 to vector<16x16xf32>
    %487 = arith.mulf %484, %486 : vector<16x16xf32>
    %488 = arith.addf %482, %487 : vector<16x16xf32>
    %c5_283 = arith.constant 5 : index
    %489 = memref.load %arg5[%c5_283] : memref<8xf32, #tpu.memory_space<smem>>
    %490 = vector.broadcast %489 : f32 to vector<16x16xf32>
    %491 = arith.addf %488, %490 : vector<16x16xf32>
    %c0_284 = arith.constant 0 : index
    %c5_285 = arith.constant 5 : index
    %c0_286 = arith.constant 0 : index
    %c0_287 = arith.constant 0 : index
    %492 = vector.load %arg6[%c0_284, %c5_285, %c0_286, %c0_287] : memref<1x8x16x16xf32, #tpu.memory_space<vmem>>, vector<1x1x16x16xf32>
    %493 = vector.shape_cast %492 : vector<1x1x16x16xf32> to vector<16x16xf32>
    %494 = vector.shape_cast %491 : vector<16x16xf32> to vector<1x1x16x16xf32>
    tpu.vector_store %arg6[%c0_284, %c5_285, %c0_286, %c0_287], %494 {strides = array<i32>} : memref<1x8x16x16xf32, #tpu.memory_space<vmem>>, vector<1x1x16x16xf32>,
    %c0_288 = arith.constant 0 : index
    %c0_289 = arith.constant 0 : index
    %c0_290 = arith.constant 0 : index
    %495 = vector.load %arg7[%c0_288, %c0_289, %c0_290] : memref<4x16x16xf32, #tpu.memory_space<vmem>>, vector<1x16x16xf32>
    %496 = vector.shape_cast %495 : vector<1x16x16xf32> to vector<16x16xf32>
    %c24_291 = arith.constant 24 : index
    %497 = memref.load %arg4[%c24_291] : memref<32xf32, #tpu.memory_space<smem>>
    %498 = vector.broadcast %497 : f32 to vector<16x16xf32>
    %499 = arith.mulf %496, %498 : vector<16x16xf32>
    %c1_292 = arith.constant 1 : index
    %c0_293 = arith.constant 0 : index
    %c0_294 = arith.constant 0 : index
    %500 = vector.load %arg7[%c1_292, %c0_293, %c0_294] : memref<4x16x16xf32, #tpu.memory_space<vmem>>, vector<1x16x16xf32>
    %501 = vector.shape_cast %500 : vector<1x16x16xf32> to vector<16x16xf32>
    %c25_295 = arith.constant 25 : index
    %502 = memref.load %arg4[%c25_295] : memref<32xf32, #tpu.memory_space<smem>>
    %503 = vector.broadcast %502 : f32 to vector<16x16xf32>
    %504 = arith.mulf %501, %503 : vector<16x16xf32>
    %505 = arith.addf %499, %504 : vector<16x16xf32>
    %c2_296 = arith.constant 2 : index
    %c0_297 = arith.constant 0 : index
    %c0_298 = arith.constant 0 : index
    %506 = vector.load %arg7[%c2_296, %c0_297, %c0_298] : memref<4x16x16xf32, #tpu.memory_space<vmem>>, vector<1x16x16xf32>
    %507 = vector.shape_cast %506 : vector<1x16x16xf32> to vector<16x16xf32>
    %c26_299 = arith.constant 26 : index
    %508 = memref.load %arg4[%c26_299] : memref<32xf32, #tpu.memory_space<smem>>
    %509 = vector.broadcast %508 : f32 to vector<16x16xf32>
    %510 = arith.mulf %507, %509 : vector<16x16xf32>
    %511 = arith.addf %505, %510 : vector<16x16xf32>
    %c3_300 = arith.constant 3 : index
    %c0_301 = arith.constant 0 : index
    %c0_302 = arith.constant 0 : index
    %512 = vector.load %arg7[%c3_300, %c0_301, %c0_302] : memref<4x16x16xf32, #tpu.memory_space<vmem>>, vector<1x16x16xf32>
    %513 = vector.shape_cast %512 : vector<1x16x16xf32> to vector<16x16xf32>
    %c27_303 = arith.constant 27 : index
    %514 = memref.load %arg4[%c27_303] : memref<32xf32, #tpu.memory_space<smem>>
    %515 = vector.broadcast %514 : f32 to vector<16x16xf32>
    %516 = arith.mulf %513, %515 : vector<16x16xf32>
    %517 = arith.addf %511, %516 : vector<16x16xf32>
    %c6_304 = arith.constant 6 : index
    %518 = memref.load %arg5[%c6_304] : memref<8xf32, #tpu.memory_space<smem>>
    %519 = vector.broadcast %518 : f32 to vector<16x16xf32>
    %520 = arith.addf %517, %519 : vector<16x16xf32>
    %c0_305 = arith.constant 0 : index
    %c6_306 = arith.constant 6 : index
    %c0_307 = arith.constant 0 : index
    %c0_308 = arith.constant 0 : index
    %521 = vector.load %arg6[%c0_305, %c6_306, %c0_307, %c0_308] : memref<1x8x16x16xf32, #tpu.memory_space<vmem>>, vector<1x1x16x16xf32>
    %522 = vector.shape_cast %521 : vector<1x1x16x16xf32> to vector<16x16xf32>
    %523 = vector.shape_cast %520 : vector<16x16xf32> to vector<1x1x16x16xf32>
    tpu.vector_store %arg6[%c0_305, %c6_306, %c0_307, %c0_308], %523 {strides = array<i32>} : memref<1x8x16x16xf32, #tpu.memory_space<vmem>>, vector<1x1x16x16xf32>,
    %c0_309 = arith.constant 0 : index
    %c0_310 = arith.constant 0 : index
    %c0_311 = arith.constant 0 : index
    %524 = vector.load %arg7[%c0_309, %c0_310, %c0_311] : memref<4x16x16xf32, #tpu.memory_space<vmem>>, vector<1x16x16xf32>
    %525 = vector.shape_cast %524 : vector<1x16x16xf32> to vector<16x16xf32>
    %c28_312 = arith.constant 28 : index
    %526 = memref.load %arg4[%c28_312] : memref<32xf32, #tpu.memory_space<smem>>
    %527 = vector.broadcast %526 : f32 to vector<16x16xf32>
    %528 = arith.mulf %525, %527 : vector<16x16xf32>
    %c1_313 = arith.constant 1 : index
    %c0_314 = arith.constant 0 : index
    %c0_315 = arith.constant 0 : index
    %529 = vector.load %arg7[%c1_313, %c0_314, %c0_315] : memref<4x16x16xf32, #tpu.memory_space<vmem>>, vector<1x16x16xf32>
    %530 = vector.shape_cast %529 : vector<1x16x16xf32> to vector<16x16xf32>
    %c29_316 = arith.constant 29 : index
    %531 = memref.load %arg4[%c29_316] : memref<32xf32, #tpu.memory_space<smem>>
    %532 = vector.broadcast %531 : f32 to vector<16x16xf32>
    %533 = arith.mulf %530, %532 : vector<16x16xf32>
    %534 = arith.addf %528, %533 : vector<16x16xf32>
    %c2_317 = arith.constant 2 : index
    %c0_318 = arith.constant 0 : index
    %c0_319 = arith.constant 0 : index
    %535 = vector.load %arg7[%c2_317, %c0_318, %c0_319] : memref<4x16x16xf32, #tpu.memory_space<vmem>>, vector<1x16x16xf32>
    %536 = vector.shape_cast %535 : vector<1x16x16xf32> to vector<16x16xf32>
    %c30_320 = arith.constant 30 : index
    %537 = memref.load %arg4[%c30_320] : memref<32xf32, #tpu.memory_space<smem>>
    %538 = vector.broadcast %537 : f32 to vector<16x16xf32>
    %539 = arith.mulf %536, %538 : vector<16x16xf32>
    %540 = arith.addf %534, %539 : vector<16x16xf32>
    %c3_321 = arith.constant 3 : index
    %c0_322 = arith.constant 0 : index
    %c0_323 = arith.constant 0 : index
    %541 = vector.load %arg7[%c3_321, %c0_322, %c0_323] : memref<4x16x16xf32, #tpu.memory_space<vmem>>, vector<1x16x16xf32>
    %542 = vector.shape_cast %541 : vector<1x16x16xf32> to vector<16x16xf32>
    %c31_324 = arith.constant 31 : index
    %543 = memref.load %arg4[%c31_324] : memref<32xf32, #tpu.memory_space<smem>>
    %544 = vector.broadcast %543 : f32 to vector<16x16xf32>
    %545 = arith.mulf %542, %544 : vector<16x16xf32>
    %546 = arith.addf %540, %545 : vector<16x16xf32>
    %c7_325 = arith.constant 7 : index
    %547 = memref.load %arg5[%c7_325] : memref<8xf32, #tpu.memory_space<smem>>
    %548 = vector.broadcast %547 : f32 to vector<16x16xf32>
    %549 = arith.addf %546, %548 : vector<16x16xf32>
    %c0_326 = arith.constant 0 : index
    %c7_327 = arith.constant 7 : index
    %c0_328 = arith.constant 0 : index
    %c0_329 = arith.constant 0 : index
    %550 = vector.load %arg6[%c0_326, %c7_327, %c0_328, %c0_329] : memref<1x8x16x16xf32, #tpu.memory_space<vmem>>, vector<1x1x16x16xf32>
    %551 = vector.shape_cast %550 : vector<1x1x16x16xf32> to vector<16x16xf32>
    %552 = vector.shape_cast %549 : vector<16x16xf32> to vector<1x1x16x16xf32>
    tpu.vector_store %arg6[%c0_326, %c7_327, %c0_328, %c0_329], %552 {strides = array<i32>} : memref<1x8x16x16xf32, #tpu.memory_space<vmem>>, vector<1x1x16x16xf32>,
    return
  }
  func.func @transform_0(%arg0: i32) -> (i32, i32, i32, i32) {
    %c0_i32 = arith.constant 0 : i32
    %c0_i32_0 = arith.constant 0 : i32
    %c0_i32_1 = arith.constant 0 : i32
    %c0_i32_2 = arith.constant 0 : i32
    return %arg0, %c0_i32, %c0_i32_0, %c0_i32_1 : i32, i32, i32, i32
  }
  func.func @transform_1(%arg0: i32) -> i32 {
    %c0_i32 = arith.constant 0 : i32
    %c0_i32_0 = arith.constant 0 : i32
    return %c0_i32 : i32
  }
  func.func @transform_2(%arg0: i32) -> i32 {
    %c0_i32 = arith.constant 0 : i32
    %c0_i32_0 = arith.constant 0 : i32
    return %c0_i32 : i32
  }
  func.func @transform_3(%arg0: i32) -> i32 {
    %c0_i32 = arith.constant 0 : i32
    %c0_i32_0 = arith.constant 0 : i32
    return %c0_i32 : i32
  }
  func.func @transform_4(%arg0: i32) -> i32 {
    %c0_i32 = arith.constant 0 : i32
    %c0_i32_0 = arith.constant 0 : i32
    return %c0_i32 : i32
  }
  func.func @transform_5(%arg0: i32) -> (i32, i32, i32, i32) {
    %c0_i32 = arith.constant 0 : i32
    %c0_i32_0 = arith.constant 0 : i32
    %c0_i32_1 = arith.constant 0 : i32
    %c0_i32_2 = arith.constant 0 : i32
    return %arg0, %c0_i32, %c0_i32_0, %c0_i32_1 : i32, i32, i32, i32
  }
}

</mosaic_0001>

<llo_original>
// kernel: tpu_custom_call.1
$region0: #{tpu_custom_call.1}
  #allocation0 [shape = 'u32[]', space=smem, size = 0x4, offset = 0x4, fixed_abs, tag = 'smem constant byte address 0x4 - core index']
  #allocation1 [shape = 'u32[144,128]{1,0:T(1,128)}', space=vmem, size = 0x12000, scoped, tag = 'internal scratch']
  #allocation2 [shape = 'f32[4,16,16]{2,1,0:T(8,128)}', space=vmem, size = 0x8000, scoped, tag = 'scratch operand']
  #allocation3 [shape = 'f32[4,18,18]{2,1,0:T(8,128)}', space=vmem, size = 0xc000, scoped, tag = 'scratch operand']
  %s0 = inlined_call_operand.hbm [shape: f32[2,4,16,16], index: 0, kind: input, shape index: {}]
  %s1 = inlined_call_operand.vmem [shape: f32[36], index: 1, kind: input, shape index: {}]
  %s2 = inlined_call_operand.vmem [shape: f32[4], index: 2, kind: input, shape index: {}]
  %s3 = inlined_call_operand.vmem [shape: f32[32], index: 3, kind: input, shape index: {}]
  %s4 = inlined_call_operand.vmem [shape: f32[8], index: 4, kind: input, shape index: {}]
  %s5 = inlined_call_operand.hbm [shape: f32[2,8,16,16], index: 5, kind: output, shape index: {}]
  %s6 = sld [smem:[#allocation0]]
  $region73: #{tpu_custom_call.1} parent=0
    _
  %s8 = ssub.s32 1, %s6
  %s9 = scalar_select 0, %s8, %s6
  $region1: #{tpu_custom_call.1} parent=0
    #allocation4 [shape = 'u8[65536]{0}', space=vmem, size = 0x10000, scoped, tag = 'input window, operand 0']
    #allocation5 [shape = 's32[2]{0}', space=sflag, size = 0x8, scoped, tag = 'scoped memory for tpu_custom_call.1']
    #allocation6 [shape = 's32[2]{0}', space=sflag, size = 0x8, scoped, tag = 'scoped memory for tpu_custom_call.1']
    #allocation7 [shape = 's32[2]{0}', space=sflag, size = 0x8, scoped, tag = 'scoped memory for tpu_custom_call.1']
    #allocation8 [shape = 'u8[512]{0}', space=smem, size = 0x200, scoped, tag = 'input window, operand 1, single buffered']
    #allocation9 [shape = 'u8[512]{0}', space=smem, size = 0x200, scoped, tag = 'input window, operand 2, single buffered']
    #allocation10 [shape = 's32[1]{0}', space=sflag, size = 0x4, scoped, tag = 'scoped memory for tpu_custom_call.1']
    #allocation11 [shape = 'u8[512]{0}', space=smem, size = 0x200, scoped, tag = 'input window, operand 3, single buffered']
    #allocation12 [shape = 'u8[512]{0}', space=smem, size = 0x200, scoped, tag = 'input window, operand 4, single buffered']
    #allocation13 [shape = 's32[1]{0}', space=sflag, size = 0x4, scoped, tag = 'scoped memory for tpu_custom_call.1']
    #allocation14 [shape = 'u8[131072]{0}', space=vmem, size = 0x20000, scoped, tag = 'output window, operand 0']
    %10 = vsyncpa [#allocation5], 0
    %s11 = scalar_lea.sflag [#allocation5], 1
    %12 = vsyncpa %s11, 0
    %13 = vsyncpa [#allocation7], 0
    %14 = vsyncpa [#allocation10], 0
    %15 = vsyncpa [#allocation13], 0
    %16 = vsyncpa [#allocation6], 0
    %s17 = scalar_lea.sflag [#allocation6], 1
    %18 = vsyncpa %s17, 0
    loop: start=0, step=1, limit=4
    $region2: #{tpu_custom_call.1} parent=1 // loop_pre_header
      _
    $region3: #{tpu_custom_call.1} parent=1 // loop_header
      %s20 = sphi 0, %s24
      %p21 = scmp.ge.s32.totalorder %s20, 4
      %s30 = sphi 0, %s32
      %s33 = sphi 0, %s30
      %s34 = sphi 0, %s33
      %s50 = sphi 0, %s34
      %s54 = sphi 0, %s54
      %s56 = sphi 0, %s54
      %s57 = sphi 0, %s56
      %s71 = sphi 0, %s57
      %s75 = sphi 0, %s75
      %s77 = sphi 0, %s75
      %s78 = sphi 0, %s77
      %s92 = sphi 0, %s78
      %s96 = sphi 0, %s96
      %s98 = sphi 0, %s96
      %s99 = sphi 0, %s98
      %s113 = sphi 0, %s99
      %s117 = sphi 0, %s117
      %s119 = sphi 0, %s117
      %s120 = sphi 0, %s119
      %s134 = sphi 0, %s120
      %s140 = sphi 0, %s142
      %s143 = sphi 0, %s140
      %s144 = sphi 0, %s143
      %s160 = sphi 0, %s144
    $region4: #{tpu_custom_call.1} parent=1 // loop_header_branch
      %23 = sbr.rel (%p21) target = $region8
    $region5: #{tpu_custom_call.1} parent=1 // loop_body
      %s25 = ssub.s32 %s20, 1
      %s26 = ssub.s32 %s20, 2
      %s27 = sadd.s32 %s20, 1
      %s28 = ssub.s32 %s20, %s27
      %p29 = scmp.eq.s32.totalorder %s28, 0
      %s31 = sadd.s32 %s30, 1
      %s32 = scalar_select %p29, %s30, %s31
      %p35 = pneg %p29
      %p36 = scmp.eq.s32.totalorder %s20, 1
      %p37 = por %p35, %p36
      %p38 = scmp.ne.s32.totalorder %s30, %s33
      %p39 = scmp.eq.s32.totalorder %s20, 0
      %p40 = por %p38, %p39
      %p41 = scmp.ne.s32.totalorder %s30, %s33
      %p42 = scmp.eq.s32.totalorder %s25, 1
      %p43 = por %p41, %p42
      %p44 = scmp.ne.s32.totalorder %s33, %s34
      %p45 = scmp.eq.s32.totalorder %s25, 0
      %p46 = por %p44, %p45
      %p47 = scmp.ne.s32.totalorder %s33, %s34
      %p48 = scmp.eq.s32.totalorder %s26, 1
      %p49 = por %p47, %p48
      %p51 = scmp.ne.s32.totalorder %s34, %s50
      %p52 = scmp.eq.s32.totalorder %s26, 0
      %p53 = por %p51, %p52
      %s55 = sadd.s32 %s54, 1
      %p58 = scmp.eq.s32.totalorder %s20, 1
      %p59 = scmp.ne.s32.totalorder %s54, %s56
      %p60 = scmp.eq.s32.totalorder %s20, 0
      %p61 = por %p59, %p60
      %p62 = scmp.ne.s32.totalorder %s54, %s56
      %p63 = scmp.eq.s32.totalorder %s25, 1
      %p64 = por %p62, %p63
      %p65 = scmp.ne.s32.totalorder %s56, %s57
      %p66 = scmp.eq.s32.totalorder %s25, 0
      %p67 = por %p65, %p66
      %p68 = scmp.ne.s32.totalorder %s56, %s57
      %p69 = scmp.eq.s32.totalorder %s26, 1
      %p70 = por %p68, %p69
      %p72 = scmp.ne.s32.totalorder %s57, %s71
      %p73 = scmp.eq.s32.totalorder %s26, 0
      %p74 = por %p72, %p73
      %s76 = sadd.s32 %s75, 1
      %p79 = scmp.eq.s32.totalorder %s20, 1
      %p80 = scmp.ne.s32.totalorder %s75, %s77
      %p81 = scmp.eq.s32.totalorder %s20, 0
      %p82 = por %p80, %p81
      %p83 = scmp.ne.s32.totalorder %s75, %s77
      %p84 = scmp.eq.s32.totalorder %s25, 1
      %p85 = por %p83, %p84
      %p86 = scmp.ne.s32.totalorder %s77, %s78
      %p87 = scmp.eq.s32.totalorder %s25, 0
      %p88 = por %p86, %p87
      %p89 = scmp.ne.s32.totalorder %s77, %s78
      %p90 = scmp.eq.s32.totalorder %s26, 1
      %p91 = por %p89, %p90
      %p93 = scmp.ne.s32.totalorder %s78, %s92
      %p94 = scmp.eq.s32.totalorder %s26, 0
      %p95 = por %p93, %p94
      %s97 = sadd.s32 %s96, 1
      %p100 = scmp.eq.s32.totalorder %s20, 1
      %p101 = scmp.ne.s32.totalorder %s96, %s98
      %p102 = scmp.eq.s32.totalorder %s20, 0
      %p103 = por %p101, %p102
      %p104 = scmp.ne.s32.totalorder %s96, %s98
      %p105 = scmp.eq.s32.totalorder %s25, 1
      %p106 = por %p104, %p105
      %p107 = scmp.ne.s32.totalorder %s98, %s99
      %p108 = scmp.eq.s32.totalorder %s25, 0
      %p109 = por %p107, %p108
      %p110 = scmp.ne.s32.totalorder %s98, %s99
      %p111 = scmp.eq.s32.totalorder %s26, 1
      %p112 = por %p110, %p111
      %p114 = scmp.ne.s32.totalorder %s99, %s113
      %p115 = scmp.eq.s32.totalorder %s26, 0
      %p116 = por %p114, %p115
      %s118 = sadd.s32 %s117, 1
      %p121 = scmp.eq.s32.totalorder %s20, 1
      %p122 = scmp.ne.s32.totalorder %s117, %s119
      %p123 = scmp.eq.s32.totalorder %s20, 0
      %p124 = por %p122, %p123
      %p125 = scmp.ne.s32.totalorder %s117, %s119
      %p126 = scmp.eq.s32.totalorder %s25, 1
      %p127 = por %p125, %p126
      %p128 = scmp.ne.s32.totalorder %s119, %s120
      %p129 = scmp.eq.s32.totalorder %s25, 0
      %p130 = por %p128, %p129
      %p131 = scmp.ne.s32.totalorder %s119, %s120
      %p132 = scmp.eq.s32.totalorder %s26, 1
      %p133 = por %p131, %p132
      %p135 = scmp.ne.s32.totalorder %s120, %s134
      %p136 = scmp.eq.s32.totalorder %s26, 0
      %p137 = por %p135, %p136
      %s138 = ssub.s32 %s20, %s27
      %p139 = scmp.eq.s32.totalorder %s138, 0
      %s141 = sadd.s32 %s140, 1
      %s142 = scalar_select %p139, %s140, %s141
      %p145 = pneg %p139
      %p146 = scmp.eq.s32.totalorder %s20, 1
      %p147 = por %p145, %p146
      %p148 = scmp.ne.s32.totalorder %s140, %s143
      %p149 = scmp.eq.s32.totalorder %s20, 0
      %p150 = por %p148, %p149
      %p151 = scmp.ne.s32.totalorder %s140, %s143
      %p152 = scmp.eq.s32.totalorder %s25, 1
      %p153 = por %p151, %p152
      %p154 = scmp.ne.s32.totalorder %s143, %s144
      %p155 = scmp.eq.s32.totalorder %s25, 0
      %p156 = por %p154, %p155
      %p157 = scmp.ne.s32.totalorder %s143, %s144
      %p158 = scmp.eq.s32.totalorder %s26, 1
      %p159 = por %p157, %p158
      %p161 = scmp.ne.s32.totalorder %s144, %s160
      %p162 = scmp.eq.s32.totalorder %s26, 0
      %p163 = por %p161, %p162
      %p164 = scmp.le.s32.totalorder 1, %s20
      %p165 = scmp.lt.s32.totalorder %s20, 3
      %p166 = pnand %p164, %p165
      %p167 = pneg %p166
      // Predicated region
      $region9: #{tpu_custom_call.1} parent=5 // pred_check
        _
      $region10: #{tpu_custom_call.1} parent=5 // pred_check_branch
        %169 = sbr.rel (%p166) target = $region12
      $region11: #{tpu_custom_call.1} parent=5 // pred_region
        %s170 = ssub.s32 %s20, 1
        // Predicated region
        $region13: #{tpu_custom_call.1} parent=11 // pred_check
          %p171 = pneg %p67
        $region14: #{tpu_custom_call.1} parent=11 // pred_check_branch
          %173 = sbr.rel (%p171) target = $region16
        $region15: #{tpu_custom_call.1} parent=11 // pred_region
          %s175 = ssub.s32 16, 16
          %176 = vsyncadd [#allocation7], %s175
          %s178 = sshll.u32 %s1, 4
          %s179 = int_to_ptr.vmem [resolvable:$true] %s178
          %181 = dma.vmem_to_smem %s179, 16, [#allocation8], [#allocation7]
        $region16: #{tpu_custom_call.1} parent=11 // pred_fallthru
          _
        // Predicated region
        $region17: #{tpu_custom_call.1} parent=11 // pred_check
          %p182 = pneg %p88
        $region18: #{tpu_custom_call.1} parent=11 // pred_check_branch
          %184 = sbr.rel (%p182) target = $region20
        $region19: #{tpu_custom_call.1} parent=11 // pred_region
          %s186 = ssub.s32 16, 16
          %187 = vsyncadd [#allocation10], %s186
          %s189 = sshll.u32 %s2, 4
          %s190 = int_to_ptr.vmem [resolvable:$true] %s189
          %192 = dma.vmem_to_smem %s190, 16, [#allocation9], [#allocation10]
        $region20: #{tpu_custom_call.1} parent=11 // pred_fallthru
          _
        // Predicated region
        $region21: #{tpu_custom_call.1} parent=11 // pred_check
          %p193 = pneg %p109
        $region22: #{tpu_custom_call.1} parent=11 // pred_check_branch
          %195 = sbr.rel (%p193) target = $region24
        $region23: #{tpu_custom_call.1} parent=11 // pred_region
          %s197 = ssub.s32 16, 16
          %198 = vsyncadd [#allocation10], %s197
          %s200 = sshll.u32 %s3, 4
          %s201 = int_to_ptr.vmem [resolvable:$true] %s200
          %203 = dma.vmem_to_smem %s201, 16, [#allocation11], [#allocation10]
        $region24: #{tpu_custom_call.1} parent=11 // pred_fallthru
          _
        // Predicated region
        $region25: #{tpu_custom_call.1} parent=11 // pred_check
          %p204 = pneg %p130
        $region26: #{tpu_custom_call.1} parent=11 // pred_check_branch
          %206 = sbr.rel (%p204) target = $region28
        $region27: #{tpu_custom_call.1} parent=11 // pred_region
          %s208 = ssub.s32 16, 16
          %209 = vsyncadd [#allocation13], %s208
          %s211 = sshll.u32 %s4, 4
          %s212 = int_to_ptr.vmem [resolvable:$true] %s211
          %214 = dma.vmem_to_smem %s212, 16, [#allocation12], [#allocation13]
        $region28: #{tpu_custom_call.1} parent=11 // pred_fallthru
          _
      $region12: #{tpu_custom_call.1} parent=5 // pred_fallthru
        _
      %p215 = scmp.lt.s32.totalorder %s20, 2
      // Predicated region
      $region29: #{tpu_custom_call.1} parent=5 // pred_check
        %p216 = pneg %p215
      $region30: #{tpu_custom_call.1} parent=5 // pred_check_branch
        %218 = sbr.rel (%p216) target = $region32
      $region31: #{tpu_custom_call.1} parent=5 // pred_region
        // Predicated region
        $region33: #{tpu_custom_call.1} parent=31 // pred_check
          %p219 = pneg %p40
        $region34: #{tpu_custom_call.1} parent=31 // pred_check_branch
          %221 = sbr.rel (%p219) target = $region36
        $region35: #{tpu_custom_call.1} parent=31 // pred_region
          %s222 = sand.u32 %s30, 1
          %s223 = scalar_lea.sflag [#allocation5], %s222
          %s224 = sand.u32 %s30, 1
          %s225 = smul.addr %s224, 64
          %s226 = scalar_lea.vmem [#allocation4], %s225
          %s228 = ssub.s32 1024, 1024
          %229 = vsyncadd %s223, %s228
          %s230 = smul.addr %s20, 8
          %s231 = smul.addr %s230, 128
          %s232 = scalar_lea.hbm %s0, %s231
          %s233 = sshll.u32 %s226, 4
          %s234 = int_to_ptr.vmem [resolvable:$true] %s233
          %239 = dma.hbm_to_vmem [thread:$0]  %s232, 1024, %s234, %s223, 128, 128, 8
        $region36: #{tpu_custom_call.1} parent=31 // pred_fallthru
          _
      $region32: #{tpu_custom_call.1} parent=5 // pred_fallthru
        _
      %p240 = scmp.le.s32.totalorder 1, %s20
      %p241 = scmp.lt.s32.totalorder %s20, 3
      %p242 = pnand %p240, %p241
      %p243 = pneg %p242
      // Predicated region
      $region37: #{tpu_custom_call.1} parent=5 // pred_check
        _
      $region38: #{tpu_custom_call.1} parent=5 // pred_check_branch
        %245 = sbr.rel (%p242) target = $region40
      $region39: #{tpu_custom_call.1} parent=5 // pred_region
        %s246 = ssub.s32 %s20, 1
        %s247 = sand.u32 %s33, 1
        %s248 = scalar_lea.sflag [#allocation5], %s247
        %s249 = sand.u32 %s33, 1
        %s250 = smul.addr %s249, 64
        %s251 = scalar_lea.vmem [#allocation4], %s250
        // Predicated region
        $region41: #{tpu_custom_call.1} parent=39 // pred_check
          %p252 = pneg %p46
        $region42: #{tpu_custom_call.1} parent=39 // pred_check_branch
          %254 = sbr.rel (%p252) target = $region44
        $region43: #{tpu_custom_call.1} parent=39 // pred_region
          %255 = dma.done %s248, 1024
        $region44: #{tpu_custom_call.1} parent=39 // pred_fallthru
          _
        // Predicated region
        $region45: #{tpu_custom_call.1} parent=39 // pred_check
          %p256 = pneg %p67
        $region46: #{tpu_custom_call.1} parent=39 // pred_check_branch
          %258 = sbr.rel (%p256) target = $region48
        $region47: #{tpu_custom_call.1} parent=39 // pred_region
          %259 = dma.done [#allocation7], 16
        $region48: #{tpu_custom_call.1} parent=39 // pred_fallthru
          _
        // Predicated region
        $region49: #{tpu_custom_call.1} parent=39 // pred_check
          %p260 = pneg %p88
        $region50: #{tpu_custom_call.1} parent=39 // pred_check_branch
          %262 = sbr.rel (%p260) target = $region52
        $region51: #{tpu_custom_call.1} parent=39 // pred_region
          %263 = dma.done [#allocation10], 16
        $region52: #{tpu_custom_call.1} parent=39 // pred_fallthru
          _
        // Predicated region
        $region53: #{tpu_custom_call.1} parent=39 // pred_check
          %p264 = pneg %p109
        $region54: #{tpu_custom_call.1} parent=39 // pred_check_branch
          %266 = sbr.rel (%p264) target = $region56
        $region55: #{tpu_custom_call.1} parent=39 // pred_region
          %267 = dma.done [#allocation10], 16
        $region56: #{tpu_custom_call.1} parent=39 // pred_fallthru
          _
        // Predicated region
        $region57: #{tpu_custom_call.1} parent=39 // pred_check
          %p268 = pneg %p130
        $region58: #{tpu_custom_call.1} parent=39 // pred_check_branch
          %270 = sbr.rel (%p268) target = $region60
        $region59: #{tpu_custom_call.1} parent=39 // pred_region
          %271 = dma.done [#allocation13], 16
        $region60: #{tpu_custom_call.1} parent=39 // pred_fallthru
          _
        %272 = sfence
        %s273 = sand.u32 %s33, 1
        %s274 = scalar_lea.sflag [#allocation5], %s273
        %s275 = sand.u32 %s33, 1
        %s276 = smul.addr %s275, 64
        %s277 = scalar_lea.vmem [#allocation4], %s276
        %p278 = pneg %p46
        %p279 = pneg %p43
        %p280 = pneg %p67
        %p281 = pneg %p64
        %p282 = pneg %p88
        %p283 = pneg %p85
        %p284 = pneg %p109
        %p285 = pneg %p106
        %p286 = pneg %p130
        %p287 = pneg %p127
        %p288 = pneg %p156
        %p289 = pneg %p153
        %s290 = sand.u32 %s143, 1
        %s291 = scalar_lea.sflag [#allocation6], %s290
        %s292 = sand.u32 %s143, 1
        %s293 = smul.addr %s292, 128
        %s294 = scalar_lea.vmem [#allocation14], %s293
        %vm295 = vcmask 146432
        %296 = vst.msk [vmem:[#allocation3] sm:$0xff] %vm295, 0.0
        %297 = vst.msk [vmem:[#allocation3 + $0x8] sm:$0xff] %vm295, 0.0
        %vm298 = vcmask 140288
        %299 = vst.msk [vmem:[#allocation3 + $0x10] sm:$0x3] %vm298, 0.0
        %300 = vst.msk [vmem:[#allocation3 + $0x18] sm:$0xff] %vm295, 0.0
        %301 = vst.msk [vmem:[#allocation3 + $0x20] sm:$0xff] %vm295, 0.0
        %302 = vst.msk [vmem:[#allocation3 + $0x28] sm:$0x3] %vm298, 0.0
        %303 = vst.msk [vmem:[#allocation3 + $0x30] sm:$0xff] %vm295, 0.0
        %304 = vst.msk [vmem:[#allocation3 + $0x38] sm:$0xff] %vm295, 0.0
        %305 = vst.msk [vmem:[#allocation3 + $0x40] sm:$0x3] %vm298, 0.0
        %306 = vst.msk [vmem:[#allocation3 + $0x48] sm:$0xff] %vm295, 0.0
        %307 = vst.msk [vmem:[#allocation3 + $0x50] sm:$0xff] %vm295, 0.0
        %308 = vst.msk [vmem:[#allocation3 + $0x58] sm:$0x3] %vm298, 0.0
        %v309 = vld [vmem:[%s251] sm:$0xff]
        %v310 = vld [vmem:[%s251 + $0x8] sm:$0xff]
        %v311 = vld [vmem:[%s251 + $0x10] sm:$0xff]
        %v312 = vld [vmem:[%s251 + $0x18] sm:$0xff]
        %v313 = vld [vmem:[%s251 + $0x20] sm:$0xff]
        %v314 = vld [vmem:[%s251 + $0x28] sm:$0xff]
        %v315 = vld [vmem:[%s251 + $0x30] sm:$0xff]
        %v316 = vld [vmem:[%s251 + $0x38] sm:$0xff]
        %325 = vrot.lane.b32.xlu0 %v309, 1
        %v326 = vpop.permute.xlu0 %325
        %327 = vrot.lane.b32.xlu0 %v310, 1
        %v328 = vpop.permute.xlu0 %327
        %329 = vrot.lane.b32.xlu0 %v311, 1
        %v330 = vpop.permute.xlu0 %329
        %331 = vrot.lane.b32.xlu0 %v312, 1
        %v332 = vpop.permute.xlu0 %331
        %333 = vrot.lane.b32.xlu0 %v313, 1
        %v334 = vpop.permute.xlu0 %333
        %335 = vrot.lane.b32.xlu0 %v314, 1
        %v336 = vpop.permute.xlu0 %335
        %337 = vrot.lane.b32.xlu0 %v315, 1
        %v338 = vpop.permute.xlu0 %337
        %339 = vrot.lane.b32.xlu0 %v316, 1
        %v340 = vpop.permute.xlu0 %339
        %vm349 = vcmask 138248
        %350 = vst.msk [vmem:[#allocation3 + $0x1] sm:$0xff] %vm349, %v326
        %351 = vst.msk [vmem:[#allocation3 + $0x9] sm:$0xff] %vm349, %v328
        %352 = vst.msk [vmem:[#allocation3 + $0x19] sm:$0xff] %vm349, %v330
        %353 = vst.msk [vmem:[#allocation3 + $0x21] sm:$0xff] %vm349, %v332
        %354 = vst.msk [vmem:[#allocation3 + $0x31] sm:$0xff] %vm349, %v334
        %355 = vst.msk [vmem:[#allocation3 + $0x39] sm:$0xff] %vm349, %v336
        %356 = vst.msk [vmem:[#allocation3 + $0x49] sm:$0xff] %vm349, %v338
        %357 = vst.msk [vmem:[#allocation3 + $0x51] sm:$0xff] %vm349, %v340
        %v358 = vld [vmem:[#allocation3] sm:$0xff]
        %v359 = vld [vmem:[#allocation3 + $0x8] sm:$0xff]
        %v360 = vld [vmem:[#allocation3 + $0x1] sm:$0xff]
        %v361 = vld [vmem:[#allocation3 + $0x9] sm:$0xff]
        %v362 = vld [vmem:[#allocation3 + $0x2] sm:$0xff]
        %v363 = vld [vmem:[#allocation3 + $0xa] sm:$0xff]
        %s364 = sld [smem:[#allocation8]]
        %v365 = vstv %s364
        %v366 = vmul.f32 %v358, %v365
        %v367 = vmul.f32 %v359, %v365
        %s368 = sld [smem:[#allocation8 + $0x1]]
        %v369 = vstv %s368
        %v370 = vmul.f32 %v358, %v369
        %v371 = vmul.f32 %v359, %v369
        %374 = vrot.lane.b32.xlu0 %v370, 127
        %v375 = vpop.permute.xlu0 %374
        %376 = vrot.lane.b32.xlu0 %v371, 127
        %v377 = vpop.permute.xlu0 %376
        %v380 = vadd.f32 %v366, %v375
        %v381 = vadd.f32 %v367, %v377
        %s382 = sld [smem:[#allocation8 + $0x2]]
        %v383 = vstv %s382
        %v384 = vmul.f32 %v358, %v383
        %v385 = vmul.f32 %v359, %v383
        %388 = vrot.lane.b32.xlu0 %v384, 126
        %v389 = vpop.permute.xlu0 %388
        %390 = vrot.lane.b32.xlu0 %v385, 126
        %v391 = vpop.permute.xlu0 %390
        %v394 = vadd.f32 %v380, %v389
        %v395 = vadd.f32 %v381, %v391
        %s396 = sld [smem:[#allocation8 + $0x3]]
        %v397 = vstv %s396
        %v398 = vmul.f32 %v360, %v397
        %v399 = vmul.f32 %v361, %v397
        %v400 = vadd.f32 %v394, %v398
        %v401 = vadd.f32 %v395, %v399
        %s402 = sld [smem:[#allocation8 + $0x4]]
        %v403 = vstv %s402
        %v404 = vmul.f32 %v360, %v403
        %v405 = vmul.f32 %v361, %v403
        %408 = vrot.lane.b32.xlu0 %v404, 127
        %v409 = vpop.permute.xlu0 %408
        %410 = vrot.lane.b32.xlu0 %v405, 127
        %v411 = vpop.permute.xlu0 %410
        %v414 = vadd.f32 %v400, %v409
        %v415 = vadd.f32 %v401, %v411
        %s416 = sld [smem:[#allocation8 + $0x5]]
        %v417 = vstv %s416
        %v418 = vmul.f32 %v360, %v417
        %v419 = vmul.f32 %v361, %v417
        %422 = vrot.lane.b32.xlu0 %v418, 126
        %v423 = vpop.permute.xlu0 %422
        %424 = vrot.lane.b32.xlu0 %v419, 126
        %v425 = vpop.permute.xlu0 %424
        %v428 = vadd.f32 %v414, %v423
        %v429 = vadd.f32 %v415, %v425
        %s430 = sld [smem:[#allocation8 + $0x6]]
        %v431 = vstv %s430
        %v432 = vmul.f32 %v362, %v431
        %v433 = vmul.f32 %v363, %v431
        %v434 = vadd.f32 %v428, %v432
        %v435 = vadd.f32 %v429, %v433
        %s436 = sld [smem:[#allocation8 + $0x7]]
        %v437 = vstv %s436
        %v438 = vmul.f32 %v362, %v437
        %v439 = vmul.f32 %v363, %v437
        %442 = vrot.lane.b32.xlu0 %v438, 127
        %v443 = vpop.permute.xlu0 %442
        %444 = vrot.lane.b32.xlu0 %v439, 127
        %v445 = vpop.permute.xlu0 %444
        %v448 = vadd.f32 %v434, %v443
        %v449 = vadd.f32 %v435, %v445
        %s450 = sld [smem:[#allocation8 + $0x8]]
        %v451 = vstv %s450
        %v452 = vmul.f32 %v362, %v451
        %v453 = vmul.f32 %v363, %v451
        %456 = vrot.lane.b32.xlu0 %v452, 126
        %v457 = vpop.permute.xlu0 %456
        %458 = vrot.lane.b32.xlu0 %v453, 126
        %v459 = vpop.permute.xlu0 %458
        %v462 = vadd.f32 %v448, %v457
        %v463 = vadd.f32 %v449, %v459
        %s464 = sld [smem:[#allocation9]]
        %v465 = vstv %s464
        %v466 = vadd.f32 %v462, %v465
        %v467 = vadd.f32 %v463, %v465
        %vm468 = vcmask 130048
        %v469 = vsel %vm468, %v466, 0.0
        %470 = vadd.xlane.f32.xlu0 %v469
        %v471 = vpop.xlane.xlu0 %470
        %v472 = vsel %vm468, %v467, 0.0
        %473 = vadd.xlane.f32.xlu0 %v472
        %v474 = vpop.xlane.xlu0 %473
        %v475 = vadd.f32 %v471, %v474
        %v476 = vrot.slane %v475, 4
        %v477 = vadd.f32 %v475, %v476
        %v478 = vrot.slane %v477, 2
        %v479 = vadd.f32 %v477, %v478
        %v480 = vrot.slane %v479, 1
        %v481 = vadd.f32 %v479, %v480
        %v482 = vmul.f32 %v481, 0.00390625
        %v483 = vsub.f32 %v466, %v482
        %v484 = vsub.f32 %v467, %v482
        %v485 = vmul.f32 %v483, %v483
        %v486 = vmul.f32 %v484, %v484
        %v487 = vsel %vm468, %v485, 0.0
        %488 = vadd.xlane.f32.xlu0 %v487
        %v489 = vpop.xlane.xlu0 %488
        %v490 = vsel %vm468, %v486, 0.0
        %491 = vadd.xlane.f32.xlu0 %v490
        %v492 = vpop.xlane.xlu0 %491
        %v493 = vadd.f32 %v489, %v492
        %v494 = vrot.slane %v493, 4
        %v495 = vadd.f32 %v493, %v494
        %v496 = vrot.slane %v495, 2
        %v497 = vadd.f32 %v495, %v496
        %v498 = vrot.slane %v497, 1
        %v499 = vadd.f32 %v497, %v498
        %v500 = vmul.f32 %v499, 0.00390625
        %v501 = vadd.f32 %v500, 1e-05
        %v502 = vrsqrt.pop %v501
        %v503 = vmul.f32 %v483, %v502
        %v504 = vmul.f32 %v484, %v502
        %505 = vst.msk [vmem:[#allocation2] sm:$0xff] %vm468, %v503
        %506 = vst.msk [vmem:[#allocation2 + $0x8] sm:$0xff] %vm468, %v504
        %s507 = scalar_lea.vmem [#allocation3], 24
        %v508 = vld [vmem:[%s507] sm:$0xff]
        %v509 = vld [vmem:[%s507 + $0x8] sm:$0xff]
        %v510 = vld [vmem:[%s507 + $0x1] sm:$0xff]
        %v511 = vld [vmem:[%s507 + $0x9] sm:$0xff]
        %v512 = vld [vmem:[%s507 + $0x2] sm:$0xff]
        %v513 = vld [vmem:[%s507 + $0xa] sm:$0xff]
        %s514 = sld [smem:[#allocation8 + $0x9]]
        %v515 = vstv %s514
        %v516 = vmul.f32 %v508, %v515
        %v517 = vmul.f32 %v509, %v515
        %s518 = sld [smem:[#allocation8 + $0xa]]
        %v519 = vstv %s518
        %v520 = vmul.f32 %v508, %v519
        %v521 = vmul.f32 %v509, %v519
        %524 = vrot.lane.b32.xlu0 %v520, 127
        %v525 = vpop.permute.xlu0 %524
        %526 = vrot.lane.b32.xlu0 %v521, 127
        %v527 = vpop.permute.xlu0 %526
        %v530 = vadd.f32 %v516, %v525
        %v531 = vadd.f32 %v517, %v527
        %s532 = sld [smem:[#allocation8 + $0xb]]
        %v533 = vstv %s532
        %v534 = vmul.f32 %v508, %v533
        %v535 = vmul.f32 %v509, %v533
        %538 = vrot.lane.b32.xlu0 %v534, 126
        %v539 = vpop.permute.xlu0 %538
        %540 = vrot.lane.b32.xlu0 %v535, 126
        %v541 = vpop.permute.xlu0 %540
        %v544 = vadd.f32 %v530, %v539
        %v545 = vadd.f32 %v531, %v541
        %s546 = sld [smem:[#allocation8 + $0xc]]
        %v547 = vstv %s546
        %v548 = vmul.f32 %v510, %v547
        %v549 = vmul.f32 %v511, %v547
        %v550 = vadd.f32 %v544, %v548
        %v551 = vadd.f32 %v545, %v549
        %s552 = sld [smem:[#allocation8 + $0xd]]
        %v553 = vstv %s552
        %v554 = vmul.f32 %v510, %v553
        %v555 = vmul.f32 %v511, %v553
        %558 = vrot.lane.b32.xlu0 %v554, 127
        %v559 = vpop.permute.xlu0 %558
        %560 = vrot.lane.b32.xlu0 %v555, 127
        %v561 = vpop.permute.xlu0 %560
        %v564 = vadd.f32 %v550, %v559
        %v565 = vadd.f32 %v551, %v561
        %s566 = sld [smem:[#allocation8 + $0xe]]
        %v567 = vstv %s566
        %v568 = vmul.f32 %v510, %v567
        %v569 = vmul.f32 %v511, %v567
        %572 = vrot.lane.b32.xlu0 %v568, 126
        %v573 = vpop.permute.xlu0 %572
        %574 = vrot.lane.b32.xlu0 %v569, 126
        %v575 = vpop.permute.xlu0 %574
        %v578 = vadd.f32 %v564, %v573
        %v579 = vadd.f32 %v565, %v575
        %s580 = sld [smem:[#allocation8 + $0xf]]
        %v581 = vstv %s580
        %v582 = vmul.f32 %v512, %v581
        %v583 = vmul.f32 %v513, %v581
        %v584 = vadd.f32 %v578, %v582
        %v585 = vadd.f32 %v579, %v583
        %s586 = sld [smem:[#allocation8 + $0x10]]
        %v587 = vstv %s586
        %v588 = vmul.f32 %v512, %v587
        %v589 = vmul.f32 %v513, %v587
        %592 = vrot.lane.b32.xlu0 %v588, 127
        %v593 = vpop.permute.xlu0 %592
        %594 = vrot.lane.b32.xlu0 %v589, 127
        %v595 = vpop.permute.xlu0 %594
        %v598 = vadd.f32 %v584, %v593
        %v599 = vadd.f32 %v585, %v595
        %s600 = sld [smem:[#allocation8 + $0x11]]
        %v601 = vstv %s600
        %v602 = vmul.f32 %v512, %v601
        %v603 = vmul.f32 %v513, %v601
        %606 = vrot.lane.b32.xlu0 %v602, 126
        %v607 = vpop.permute.xlu0 %606
        %608 = vrot.lane.b32.xlu0 %v603, 126
        %v609 = vpop.permute.xlu0 %608
        %v612 = vadd.f32 %v598, %v607
        %v613 = vadd.f32 %v599, %v609
        %s614 = sld [smem:[#allocation9 + $0x1]]
        %v615 = vstv %s614
        %v616 = vadd.f32 %v612, %v615
        %v617 = vadd.f32 %v613, %v615
        %v618 = vsel %vm468, %v616, 0.0
        %619 = vadd.xlane.f32.xlu0 %v618
        %v620 = vpop.xlane.xlu0 %619
        %v621 = vsel %vm468, %v617, 0.0
        %622 = vadd.xlane.f32.xlu0 %v621
        %v623 = vpop.xlane.xlu0 %622
        %v624 = vadd.f32 %v620, %v623
        %v625 = vrot.slane %v624, 4
        %v626 = vadd.f32 %v624, %v625
        %v627 = vrot.slane %v626, 2
        %v628 = vadd.f32 %v626, %v627
        %v629 = vrot.slane %v628, 1
        %v630 = vadd.f32 %v628, %v629
        %v631 = vmul.f32 %v630, 0.00390625
        %v632 = vsub.f32 %v616, %v631
        %v633 = vsub.f32 %v617, %v631
        %v634 = vmul.f32 %v632, %v632
        %v635 = vmul.f32 %v633, %v633
        %v636 = vsel %vm468, %v634, 0.0
        %637 = vadd.xlane.f32.xlu0 %v636
        %v638 = vpop.xlane.xlu0 %637
        %v639 = vsel %vm468, %v635, 0.0
        %640 = vadd.xlane.f32.xlu0 %v639
        %v641 = vpop.xlane.xlu0 %640
        %v642 = vadd.f32 %v638, %v641
        %v643 = vrot.slane %v642, 4
        %v644 = vadd.f32 %v642, %v643
        %v645 = vrot.slane %v644, 2
        %v646 = vadd.f32 %v644, %v645
        %v647 = vrot.slane %v646, 1
        %v648 = vadd.f32 %v646, %v647
        %v649 = vmul.f32 %v648, 0.00390625
        %v650 = vadd.f32 %v649, 1e-05
        %v651 = vrsqrt.pop %v650
        %v652 = vmul.f32 %v632, %v651
        %v653 = vmul.f32 %v633, %v651
        %s654 = scalar_lea.vmem [#allocation2], 16
        %655 = vst.msk [vmem:[%s654] sm:$0xff] %vm468, %v652
        %656 = vst.msk [vmem:[%s654 + $0x8] sm:$0xff] %vm468, %v653
        %s657 = scalar_lea.vmem [#allocation3], 48
        %v658 = vld [vmem:[%s657] sm:$0xff]
        %v659 = vld [vmem:[%s657 + $0x8] sm:$0xff]
        %v660 = vld [vmem:[%s657 + $0x1] sm:$0xff]
        %v661 = vld [vmem:[%s657 + $0x9] sm:$0xff]
        %v662 = vld [vmem:[%s657 + $0x2] sm:$0xff]
        %v663 = vld [vmem:[%s657 + $0xa] sm:$0xff]
        %s664 = sld [smem:[#allocation8 + $0x12]]
        %v665 = vstv %s664
        %v666 = vmul.f32 %v658, %v665
        %v667 = vmul.f32 %v659, %v665
        %s668 = sld [smem:[#allocation8 + $0x13]]
        %v669 = vstv %s668
        %v670 = vmul.f32 %v658, %v669
        %v671 = vmul.f32 %v659, %v669
        %674 = vrot.lane.b32.xlu0 %v670, 127
        %v675 = vpop.permute.xlu0 %674
        %676 = vrot.lane.b32.xlu0 %v671, 127
        %v677 = vpop.permute.xlu0 %676
        %v680 = vadd.f32 %v666, %v675
        %v681 = vadd.f32 %v667, %v677
        %s682 = sld [smem:[#allocation8 + $0x14]]
        %v683 = vstv %s682
        %v684 = vmul.f32 %v658, %v683
        %v685 = vmul.f32 %v659, %v683
        %688 = vrot.lane.b32.xlu0 %v684, 126
        %v689 = vpop.permute.xlu0 %688
        %690 = vrot.lane.b32.xlu0 %v685, 126
        %v691 = vpop.permute.xlu0 %690
        %v694 = vadd.f32 %v680, %v689
        %v695 = vadd.f32 %v681, %v691
        %s696 = sld [smem:[#allocation8 + $0x15]]
        %v697 = vstv %s696
        %v698 = vmul.f32 %v660, %v697
        %v699 = vmul.f32 %v661, %v697
        %v700 = vadd.f32 %v694, %v698
        %v701 = vadd.f32 %v695, %v699
        %s702 = sld [smem:[#allocation8 + $0x16]]
        %v703 = vstv %s702
        %v704 = vmul.f32 %v660, %v703
        %v705 = vmul.f32 %v661, %v703
        %708 = vrot.lane.b32.xlu0 %v704, 127
        %v709 = vpop.permute.xlu0 %708
        %710 = vrot.lane.b32.xlu0 %v705, 127
        %v711 = vpop.permute.xlu0 %710
        %v714 = vadd.f32 %v700, %v709
        %v715 = vadd.f32 %v701, %v711
        %s716 = sld [smem:[#allocation8 + $0x17]]
        %v717 = vstv %s716
        %v718 = vmul.f32 %v660, %v717
        %v719 = vmul.f32 %v661, %v717
        %722 = vrot.lane.b32.xlu0 %v718, 126
        %v723 = vpop.permute.xlu0 %722
        %724 = vrot.lane.b32.xlu0 %v719, 126
        %v725 = vpop.permute.xlu0 %724
        %v728 = vadd.f32 %v714, %v723
        %v729 = vadd.f32 %v715, %v725
        %s730 = sld [smem:[#allocation8 + $0x18]]
        %v731 = vstv %s730
        %v732 = vmul.f32 %v662, %v731
        %v733 = vmul.f32 %v663, %v731
        %v734 = vadd.f32 %v728, %v732
        %v735 = vadd.f32 %v729, %v733
        %s736 = sld [smem:[#allocation8 + $0x19]]
        %v737 = vstv %s736
        %v738 = vmul.f32 %v662, %v737
        %v739 = vmul.f32 %v663, %v737
        %742 = vrot.lane.b32.xlu0 %v738, 127
        %v743 = vpop.permute.xlu0 %742
        %744 = vrot.lane.b32.xlu0 %v739, 127
        %v745 = vpop.permute.xlu0 %744
        %v748 = vadd.f32 %v734, %v743
        %v749 = vadd.f32 %v735, %v745
        %s750 = sld [smem:[#allocation8 + $0x1a]]
        %v751 = vstv %s750
        %v752 = vmul.f32 %v662, %v751
        %v753 = vmul.f32 %v663, %v751
        %756 = vrot.lane.b32.xlu0 %v752, 126
        %v757 = vpop.permute.xlu0 %756
        %758 = vrot.lane.b32.xlu0 %v753, 126
        %v759 = vpop.permute.xlu0 %758
        %v762 = vadd.f32 %v748, %v757
        %v763 = vadd.f32 %v749, %v759
        %s764 = sld [smem:[#allocation9 + $0x2]]
        %v765 = vstv %s764
        %v766 = vadd.f32 %v762, %v765
        %v767 = vadd.f32 %v763, %v765
        %v768 = vsel %vm468, %v766, 0.0
        %769 = vadd.xlane.f32.xlu0 %v768
        %v770 = vpop.xlane.xlu0 %769
        %v771 = vsel %vm468, %v767, 0.0
        %772 = vadd.xlane.f32.xlu0 %v771
        %v773 = vpop.xlane.xlu0 %772
        %v774 = vadd.f32 %v770, %v773
        %v775 = vrot.slane %v774, 4
        %v776 = vadd.f32 %v774, %v775
        %v777 = vrot.slane %v776, 2
        %v778 = vadd.f32 %v776, %v777
        %v779 = vrot.slane %v778, 1
        %v780 = vadd.f32 %v778, %v779
        %v781 = vmul.f32 %v780, 0.00390625
        %v782 = vsub.f32 %v766, %v781
        %v783 = vsub.f32 %v767, %v781
        %v784 = vmul.f32 %v782, %v782
        %v785 = vmul.f32 %v783, %v783
        %v786 = vsel %vm468, %v784, 0.0
        %787 = vadd.xlane.f32.xlu0 %v786
        %v788 = vpop.xlane.xlu0 %787
        %v789 = vsel %vm468, %v785, 0.0
        %790 = vadd.xlane.f32.xlu0 %v789
        %v791 = vpop.xlane.xlu0 %790
        %v792 = vadd.f32 %v788, %v791
        %v793 = vrot.slane %v792, 4
        %v794 = vadd.f32 %v792, %v793
        %v795 = vrot.slane %v794, 2
        %v796 = vadd.f32 %v794, %v795
        %v797 = vrot.slane %v796, 1
        %v798 = vadd.f32 %v796, %v797
        %v799 = vmul.f32 %v798, 0.00390625
        %v800 = vadd.f32 %v799, 1e-05
        %v801 = vrsqrt.pop %v800
        %v802 = vmul.f32 %v782, %v801
        %v803 = vmul.f32 %v783, %v801
        %s804 = scalar_lea.vmem [#allocation2], 32
        %805 = vst.msk [vmem:[%s804] sm:$0xff] %vm468, %v802
        %806 = vst.msk [vmem:[%s804 + $0x8] sm:$0xff] %vm468, %v803
        %s807 = scalar_lea.vmem [#allocation3], 72
        %v808 = vld [vmem:[%s807] sm:$0xff]
        %v809 = vld [vmem:[%s807 + $0x8] sm:$0xff]
        %v810 = vld [vmem:[%s807 + $0x1] sm:$0xff]
        %v811 = vld [vmem:[%s807 + $0x9] sm:$0xff]
        %v812 = vld [vmem:[%s807 + $0x2] sm:$0xff]
        %v813 = vld [vmem:[%s807 + $0xa] sm:$0xff]
        %s814 = sld [smem:[#allocation8 + $0x1b]]
        %v815 = vstv %s814
        %v816 = vmul.f32 %v808, %v815
        %v817 = vmul.f32 %v809, %v815
        %s818 = sld [smem:[#allocation8 + $0x1c]]
        %v819 = vstv %s818
        %v820 = vmul.f32 %v808, %v819
        %v821 = vmul.f32 %v809, %v819
        %824 = vrot.lane.b32.xlu0 %v820, 127
        %v825 = vpop.permute.xlu0 %824
        %826 = vrot.lane.b32.xlu0 %v821, 127
        %v827 = vpop.permute.xlu0 %826
        %v830 = vadd.f32 %v816, %v825
        %v831 = vadd.f32 %v817, %v827
        %s832 = sld [smem:[#allocation8 + $0x1d]]
        %v833 = vstv %s832
        %v834 = vmul.f32 %v808, %v833
        %v835 = vmul.f32 %v809, %v833
        %838 = vrot.lane.b32.xlu0 %v834, 126
        %v839 = vpop.permute.xlu0 %838
        %840 = vrot.lane.b32.xlu0 %v835, 126
        %v841 = vpop.permute.xlu0 %840
        %v844 = vadd.f32 %v830, %v839
        %v845 = vadd.f32 %v831, %v841
        %s846 = sld [smem:[#allocation8 + $0x1e]]
        %v847 = vstv %s846
        %v848 = vmul.f32 %v810, %v847
        %v849 = vmul.f32 %v811, %v847
        %v850 = vadd.f32 %v844, %v848
        %v851 = vadd.f32 %v845, %v849
        %s852 = sld [smem:[#allocation8 + $0x1f]]
        %v853 = vstv %s852
        %v854 = vmul.f32 %v810, %v853
        %v855 = vmul.f32 %v811, %v853
        %858 = vrot.lane.b32.xlu0 %v854, 127
        %v859 = vpop.permute.xlu0 %858
        %860 = vrot.lane.b32.xlu0 %v855, 127
        %v861 = vpop.permute.xlu0 %860
        %v864 = vadd.f32 %v850, %v859
        %v865 = vadd.f32 %v851, %v861
        %s866 = sld [smem:[#allocation8 + $0x20]]
        %v867 = vstv %s866
        %v868 = vmul.f32 %v810, %v867
        %v869 = vmul.f32 %v811, %v867
        %872 = vrot.lane.b32.xlu0 %v868, 126
        %v873 = vpop.permute.xlu0 %872
        %874 = vrot.lane.b32.xlu0 %v869, 126
        %v875 = vpop.permute.xlu0 %874
        %v878 = vadd.f32 %v864, %v873
        %v879 = vadd.f32 %v865, %v875
        %s880 = sld [smem:[#allocation8 + $0x21]]
        %v881 = vstv %s880
        %v882 = vmul.f32 %v812, %v881
        %v883 = vmul.f32 %v813, %v881
        %v884 = vadd.f32 %v878, %v882
        %v885 = vadd.f32 %v879, %v883
        %s886 = sld [smem:[#allocation8 + $0x22]]
        %v887 = vstv %s886
        %v888 = vmul.f32 %v812, %v887
        %v889 = vmul.f32 %v813, %v887
        %892 = vrot.lane.b32.xlu0 %v888, 127
        %v893 = vpop.permute.xlu0 %892
        %894 = vrot.lane.b32.xlu0 %v889, 127
        %v895 = vpop.permute.xlu0 %894
        %v898 = vadd.f32 %v884, %v893
        %v899 = vadd.f32 %v885, %v895
        %s900 = sld [smem:[#allocation8 + $0x23]]
        %v901 = vstv %s900
        %v902 = vmul.f32 %v812, %v901
        %v903 = vmul.f32 %v813, %v901
        %906 = vrot.lane.b32.xlu0 %v902, 126
        %v907 = vpop.permute.xlu0 %906
        %908 = vrot.lane.b32.xlu0 %v903, 126
        %v909 = vpop.permute.xlu0 %908
        %v912 = vadd.f32 %v898, %v907
        %v913 = vadd.f32 %v899, %v909
        %s914 = sld [smem:[#allocation9 + $0x3]]
        %v915 = vstv %s914
        %v916 = vadd.f32 %v912, %v915
        %v917 = vadd.f32 %v913, %v915
        %v918 = vsel %vm468, %v916, 0.0
        %919 = vadd.xlane.f32.xlu0 %v918
        %v920 = vpop.xlane.xlu0 %919
        %v921 = vsel %vm468, %v917, 0.0
        %922 = vadd.xlane.f32.xlu0 %v921
        %v923 = vpop.xlane.xlu0 %922
        %v924 = vadd.f32 %v920, %v923
        %v925 = vrot.slane %v924, 4
        %v926 = vadd.f32 %v924, %v925
        %v927 = vrot.slane %v926, 2
        %v928 = vadd.f32 %v926, %v927
        %v929 = vrot.slane %v928, 1
        %v930 = vadd.f32 %v928, %v929
        %v931 = vmul.f32 %v930, 0.00390625
        %v932 = vsub.f32 %v916, %v931
        %v933 = vsub.f32 %v917, %v931
        %v934 = vmul.f32 %v932, %v932
        %v935 = vmul.f32 %v933, %v933
        %v936 = vsel %vm468, %v934, 0.0
        %937 = vadd.xlane.f32.xlu0 %v936
        %v938 = vpop.xlane.xlu0 %937
        %v939 = vsel %vm468, %v935, 0.0
        %940 = vadd.xlane.f32.xlu0 %v939
        %v941 = vpop.xlane.xlu0 %940
        %v942 = vadd.f32 %v938, %v941
        %v943 = vrot.slane %v942, 4
        %v944 = vadd.f32 %v942, %v943
        %v945 = vrot.slane %v944, 2
        %v946 = vadd.f32 %v944, %v945
        %v947 = vrot.slane %v946, 1
        %v948 = vadd.f32 %v946, %v947
        %v949 = vmul.f32 %v948, 0.00390625
        %v950 = vadd.f32 %v949, 1e-05
        %v951 = vrsqrt.pop %v950
        %v952 = vmul.f32 %v932, %v951
        %v953 = vmul.f32 %v933, %v951
        %s954 = scalar_lea.vmem [#allocation2], 48
        %955 = vst.msk [vmem:[%s954] sm:$0xff] %vm468, %v952
        %956 = vst.msk [vmem:[%s954 + $0x8] sm:$0xff] %vm468, %v953
        %v957 = vld [vmem:[#allocation2] sm:$0xff]
        %v958 = vld [vmem:[#allocation2 + $0x8] sm:$0xff]
        %s959 = sld [smem:[#allocation11]]
        %v960 = vstv %s959
        %v961 = vmul.f32 %v957, %v960
        %v962 = vmul.f32 %v958, %v960
        %v963 = vld [vmem:[%s654] sm:$0xff]
        %v964 = vld [vmem:[%s654 + $0x8] sm:$0xff]
        %s965 = sld [smem:[#allocation11 + $0x1]]
        %v966 = vstv %s965
        %v967 = vmul.f32 %v963, %v966
        %v968 = vmul.f32 %v964, %v966
        %v969 = vadd.f32 %v961, %v967
        %v970 = vadd.f32 %v962, %v968
        %v971 = vld [vmem:[%s804] sm:$0xff]
        %v972 = vld [vmem:[%s804 + $0x8] sm:$0xff]
        %s973 = sld [smem:[#allocation11 + $0x2]]
        %v974 = vstv %s973
        %v975 = vmul.f32 %v971, %v974
        %v976 = vmul.f32 %v972, %v974
        %v977 = vadd.f32 %v969, %v975
        %v978 = vadd.f32 %v970, %v976
        %v979 = vld [vmem:[%s954] sm:$0xff]
        %v980 = vld [vmem:[%s954 + $0x8] sm:$0xff]
        %s981 = sld [smem:[#allocation11 + $0x3]]
        %v982 = vstv %s981
        %v983 = vmul.f32 %v979, %v982
        %v984 = vmul.f32 %v980, %v982
        %v985 = vadd.f32 %v977, %v983
        %v986 = vadd.f32 %v978, %v984
        %s987 = sld [smem:[#allocation12]]
        %v988 = vstv %s987
        %v989 = vadd.f32 %v985, %v988
        %v990 = vadd.f32 %v986, %v988
        %991 = vst.msk [vmem:[%s294] sm:$0xff] %vm468, %v989
        %992 = vst.msk [vmem:[%s294 + $0x8] sm:$0xff] %vm468, %v990
        %v993 = vld [vmem:[#allocation2] sm:$0xff]
        %v994 = vld [vmem:[#allocation2 + $0x8] sm:$0xff]
        %s995 = sld [smem:[#allocation11 + $0x4]]
        %v996 = vstv %s995
        %v997 = vmul.f32 %v993, %v996
        %v998 = vmul.f32 %v994, %v996
        %v999 = vld [vmem:[%s654] sm:$0xff]
        %v1000 = vld [vmem:[%s654 + $0x8] sm:$0xff]
        %s1001 = sld [smem:[#allocation11 + $0x5]]
        %v1002 = vstv %s1001
        %v1003 = vmul.f32 %v999, %v1002
        %v1004 = vmul.f32 %v1000, %v1002
        %v1005 = vadd.f32 %v997, %v1003
        %v1006 = vadd.f32 %v998, %v1004
        %v1007 = vld [vmem:[%s804] sm:$0xff]
        %v1008 = vld [vmem:[%s804 + $0x8] sm:$0xff]
        %s1009 = sld [smem:[#allocation11 + $0x6]]
        %v1010 = vstv %s1009
        %v1011 = vmul.f32 %v1007, %v1010
        %v1012 = vmul.f32 %v1008, %v1010
        %v1013 = vadd.f32 %v1005, %v1011
        %v1014 = vadd.f32 %v1006, %v1012
        %v1015 = vld [vmem:[%s954] sm:$0xff]
        %v1016 = vld [vmem:[%s954 + $0x8] sm:$0xff]
        %s1017 = sld [smem:[#allocation11 + $0x7]]
        %v1018 = vstv %s1017
        %v1019 = vmul.f32 %v1015, %v1018
        %v1020 = vmul.f32 %v1016, %v1018
        %v1021 = vadd.f32 %v1013, %v1019
        %v1022 = vadd.f32 %v1014, %v1020
        %s1023 = sld [smem:[#allocation12 + $0x1]]
        %v1024 = vstv %s1023
        %v1025 = vadd.f32 %v1021, %v1024
        %v1026 = vadd.f32 %v1022, %v1024
        %s1027 = scalar_lea.vmem %s294, 16 [#allocation14]
        %1028 = vst.msk [vmem:[%s1027] sm:$0xff] %vm468, %v1025
        %1029 = vst.msk [vmem:[%s1027 + $0x8] sm:$0xff] %vm468, %v1026
        %v1030 = vld [vmem:[#allocation2] sm:$0xff]
        %v1031 = vld [vmem:[#allocation2 + $0x8] sm:$0xff]
        %s1032 = sld [smem:[#allocation11 + $0x8]]
        %v1033 = vstv %s1032
        %v1034 = vmul.f32 %v1030, %v1033
        %v1035 = vmul.f32 %v1031, %v1033
        %v1036 = vld [vmem:[%s654] sm:$0xff]
        %v1037 = vld [vmem:[%s654 + $0x8] sm:$0xff]
        %s1038 = sld [smem:[#allocation11 + $0x9]]
        %v1039 = vstv %s1038
        %v1040 = vmul.f32 %v1036, %v1039
        %v1041 = vmul.f32 %v1037, %v1039
        %v1042 = vadd.f32 %v1034, %v1040
        %v1043 = vadd.f32 %v1035, %v1041
        %v1044 = vld [vmem:[%s804] sm:$0xff]
        %v1045 = vld [vmem:[%s804 + $0x8] sm:$0xff]
        %s1046 = sld [smem:[#allocation11 + $0xa]]
        %v1047 = vstv %s1046
        %v1048 = vmul.f32 %v1044, %v1047
        %v1049 = vmul.f32 %v1045, %v1047
        %v1050 = vadd.f32 %v1042, %v1048
        %v1051 = vadd.f32 %v1043, %v1049
        %v1052 = vld [vmem:[%s954] sm:$0xff]
        %v1053 = vld [vmem:[%s954 + $0x8] sm:$0xff]
        %s1054 = sld [smem:[#allocation11 + $0xb]]
        %v1055 = vstv %s1054
        %v1056 = vmul.f32 %v1052, %v1055
        %v1057 = vmul.f32 %v1053, %v1055
        %v1058 = vadd.f32 %v1050, %v1056
        %v1059 = vadd.f32 %v1051, %v1057
        %s1060 = sld [smem:[#allocation12 + $0x2]]
        %v1061 = vstv %s1060
        %v1062 = vadd.f32 %v1058, %v1061
        %v1063 = vadd.f32 %v1059, %v1061
        %s1064 = scalar_lea.vmem %s294, 32 [#allocation14]
        %1065 = vst.msk [vmem:[%s1064] sm:$0xff] %vm468, %v1062
        %1066 = vst.msk [vmem:[%s1064 + $0x8] sm:$0xff] %vm468, %v1063
        %v1067 = vld [vmem:[#allocation2] sm:$0xff]
        %v1068 = vld [vmem:[#allocation2 + $0x8] sm:$0xff]
        %s1069 = sld [smem:[#allocation11 + $0xc]]
        %v1070 = vstv %s1069
        %v1071 = vmul.f32 %v1067, %v1070
        %v1072 = vmul.f32 %v1068, %v1070
        %v1073 = vld [vmem:[%s654] sm:$0xff]
        %v1074 = vld [vmem:[%s654 + $0x8] sm:$0xff]
        %s1075 = sld [smem:[#allocation11 + $0xd]]
        %v1076 = vstv %s1075
        %v1077 = vmul.f32 %v1073, %v1076
        %v1078 = vmul.f32 %v1074, %v1076
        %v1079 = vadd.f32 %v1071, %v1077
        %v1080 = vadd.f32 %v1072, %v1078
        %v1081 = vld [vmem:[%s804] sm:$0xff]
        %v1082 = vld [vmem:[%s804 + $0x8] sm:$0xff]
        %s1083 = sld [smem:[#allocation11 + $0xe]]
        %v1084 = vstv %s1083
        %v1085 = vmul.f32 %v1081, %v1084
        %v1086 = vmul.f32 %v1082, %v1084
        %v1087 = vadd.f32 %v1079, %v1085
        %v1088 = vadd.f32 %v1080, %v1086
        %v1089 = vld [vmem:[%s954] sm:$0xff]
        %v1090 = vld [vmem:[%s954 + $0x8] sm:$0xff]
        %s1091 = sld [smem:[#allocation11 + $0xf]]
        %v1092 = vstv %s1091
        %v1093 = vmul.f32 %v1089, %v1092
        %v1094 = vmul.f32 %v1090, %v1092
        %v1095 = vadd.f32 %v1087, %v1093
        %v1096 = vadd.f32 %v1088, %v1094
        %s1097 = sld [smem:[#allocation12 + $0x3]]
        %v1098 = vstv %s1097
        %v1099 = vadd.f32 %v1095, %v1098
        %v1100 = vadd.f32 %v1096, %v1098
        %s1101 = scalar_lea.vmem %s294, 48 [#allocation14]
        %1102 = vst.msk [vmem:[%s1101] sm:$0xff] %vm468, %v1099
        %1103 = vst.msk [vmem:[%s1101 + $0x8] sm:$0xff] %vm468, %v1100
        %v1104 = vld [vmem:[#allocation2] sm:$0xff]
        %v1105 = vld [vmem:[#allocation2 + $0x8] sm:$0xff]
        %s1106 = sld [smem:[#allocation11 + $0x10]]
        %v1107 = vstv %s1106
        %v1108 = vmul.f32 %v1104, %v1107
        %v1109 = vmul.f32 %v1105, %v1107
        %v1110 = vld [vmem:[%s654] sm:$0xff]
        %v1111 = vld [vmem:[%s654 + $0x8] sm:$0xff]
        %s1112 = sld [smem:[#allocation11 + $0x11]]
        %v1113 = vstv %s1112
        %v1114 = vmul.f32 %v1110, %v1113
        %v1115 = vmul.f32 %v1111, %v1113
        %v1116 = vadd.f32 %v1108, %v1114
        %v1117 = vadd.f32 %v1109, %v1115
        %v1118 = vld [vmem:[%s804] sm:$0xff]
        %v1119 = vld [vmem:[%s804 + $0x8] sm:$0xff]
        %s1120 = sld [smem:[#allocation11 + $0x12]]
        %v1121 = vstv %s1120
        %v1122 = vmul.f32 %v1118, %v1121
        %v1123 = vmul.f32 %v1119, %v1121
        %v1124 = vadd.f32 %v1116, %v1122
        %v1125 = vadd.f32 %v1117, %v1123
        %v1126 = vld [vmem:[%s954] sm:$0xff]
        %v1127 = vld [vmem:[%s954 + $0x8] sm:$0xff]
        %s1128 = sld [smem:[#allocation11 + $0x13]]
        %v1129 = vstv %s1128
        %v1130 = vmul.f32 %v1126, %v1129
        %v1131 = vmul.f32 %v1127, %v1129
        %v1132 = vadd.f32 %v1124, %v1130
        %v1133 = vadd.f32 %v1125, %v1131
        %s1134 = sld [smem:[#allocation12 + $0x4]]
        %v1135 = vstv %s1134
        %v1136 = vadd.f32 %v1132, %v1135
        %v1137 = vadd.f32 %v1133, %v1135
        %s1138 = scalar_lea.vmem %s294, 64 [#allocation14]
        %1139 = vst.msk [vmem:[%s1138] sm:$0xff] %vm468, %v1136
        %1140 = vst.msk [vmem:[%s1138 + $0x8] sm:$0xff] %vm468, %v1137
        %v1141 = vld [vmem:[#allocation2] sm:$0xff]
        %v1142 = vld [vmem:[#allocation2 + $0x8] sm:$0xff]
        %s1143 = sld [smem:[#allocation11 + $0x14]]
        %v1144 = vstv %s1143
        %v1145 = vmul.f32 %v1141, %v1144
        %v1146 = vmul.f32 %v1142, %v1144
        %v1147 = vld [vmem:[%s654] sm:$0xff]
        %v1148 = vld [vmem:[%s654 + $0x8] sm:$0xff]
        %s1149 = sld [smem:[#allocation11 + $0x15]]
        %v1150 = vstv %s1149
        %v1151 = vmul.f32 %v1147, %v1150
        %v1152 = vmul.f32 %v1148, %v1150
        %v1153 = vadd.f32 %v1145, %v1151
        %v1154 = vadd.f32 %v1146, %v1152
        %v1155 = vld [vmem:[%s804] sm:$0xff]
        %v1156 = vld [vmem:[%s804 + $0x8] sm:$0xff]
        %s1157 = sld [smem:[#allocation11 + $0x16]]
        %v1158 = vstv %s1157
        %v1159 = vmul.f32 %v1155, %v1158
        %v1160 = vmul.f32 %v1156, %v1158
        %v1161 = vadd.f32 %v1153, %v1159
        %v1162 = vadd.f32 %v1154, %v1160
        %v1163 = vld [vmem:[%s954] sm:$0xff]
        %v1164 = vld [vmem:[%s954 + $0x8] sm:$0xff]
        %s1165 = sld [smem:[#allocation11 + $0x17]]
        %v1166 = vstv %s1165
        %v1167 = vmul.f32 %v1163, %v1166
        %v1168 = vmul.f32 %v1164, %v1166
        %v1169 = vadd.f32 %v1161, %v1167
        %v1170 = vadd.f32 %v1162, %v1168
        %s1171 = sld [smem:[#allocation12 + $0x5]]
        %v1172 = vstv %s1171
        %v1173 = vadd.f32 %v1169, %v1172
        %v1174 = vadd.f32 %v1170, %v1172
        %s1175 = scalar_lea.vmem %s294, 80 [#allocation14]
        %1176 = vst.msk [vmem:[%s1175] sm:$0xff] %vm468, %v1173
        %1177 = vst.msk [vmem:[%s1175 + $0x8] sm:$0xff] %vm468, %v1174
        %v1178 = vld [vmem:[#allocation2] sm:$0xff]
        %v1179 = vld [vmem:[#allocation2 + $0x8] sm:$0xff]
        %s1180 = sld [smem:[#allocation11 + $0x18]]
        %v1181 = vstv %s1180
        %v1182 = vmul.f32 %v1178, %v1181
        %v1183 = vmul.f32 %v1179, %v1181
        %v1184 = vld [vmem:[%s654] sm:$0xff]
        %v1185 = vld [vmem:[%s654 + $0x8] sm:$0xff]
        %s1186 = sld [smem:[#allocation11 + $0x19]]
        %v1187 = vstv %s1186
        %v1188 = vmul.f32 %v1184, %v1187
        %v1189 = vmul.f32 %v1185, %v1187
        %v1190 = vadd.f32 %v1182, %v1188
        %v1191 = vadd.f32 %v1183, %v1189
        %v1192 = vld [vmem:[%s804] sm:$0xff]
        %v1193 = vld [vmem:[%s804 + $0x8] sm:$0xff]
        %s1194 = sld [smem:[#allocation11 + $0x1a]]
        %v1195 = vstv %s1194
        %v1196 = vmul.f32 %v1192, %v1195
        %v1197 = vmul.f32 %v1193, %v1195
        %v1198 = vadd.f32 %v1190, %v1196
        %v1199 = vadd.f32 %v1191, %v1197
        %v1200 = vld [vmem:[%s954] sm:$0xff]
        %v1201 = vld [vmem:[%s954 + $0x8] sm:$0xff]
        %s1202 = sld [smem:[#allocation11 + $0x1b]]
        %v1203 = vstv %s1202
        %v1204 = vmul.f32 %v1200, %v1203
        %v1205 = vmul.f32 %v1201, %v1203
        %v1206 = vadd.f32 %v1198, %v1204
        %v1207 = vadd.f32 %v1199, %v1205
        %s1208 = sld [smem:[#allocation12 + $0x6]]
        %v1209 = vstv %s1208
        %v1210 = vadd.f32 %v1206, %v1209
        %v1211 = vadd.f32 %v1207, %v1209
        %s1212 = scalar_lea.vmem %s294, 96 [#allocation14]
        %1213 = vst.msk [vmem:[%s1212] sm:$0xff] %vm468, %v1210
        %1214 = vst.msk [vmem:[%s1212 + $0x8] sm:$0xff] %vm468, %v1211
        %v1215 = vld [vmem:[#allocation2] sm:$0xff]
        %v1216 = vld [vmem:[#allocation2 + $0x8] sm:$0xff]
        %s1217 = sld [smem:[#allocation11 + $0x1c]]
        %v1218 = vstv %s1217
        %v1219 = vmul.f32 %v1215, %v1218
        %v1220 = vmul.f32 %v1216, %v1218
        %v1221 = vld [vmem:[%s654] sm:$0xff]
        %v1222 = vld [vmem:[%s654 + $0x8] sm:$0xff]
        %s1223 = sld [smem:[#allocation11 + $0x1d]]
        %v1224 = vstv %s1223
        %v1225 = vmul.f32 %v1221, %v1224
        %v1226 = vmul.f32 %v1222, %v1224
        %v1227 = vadd.f32 %v1219, %v1225
        %v1228 = vadd.f32 %v1220, %v1226
        %v1229 = vld [vmem:[%s804] sm:$0xff]
        %v1230 = vld [vmem:[%s804 + $0x8] sm:$0xff]
        %s1231 = sld [smem:[#allocation11 + $0x1e]]
        %v1232 = vstv %s1231
        %v1233 = vmul.f32 %v1229, %v1232
        %v1234 = vmul.f32 %v1230, %v1232
        %v1235 = vadd.f32 %v1227, %v1233
        %v1236 = vadd.f32 %v1228, %v1234
        %v1237 = vld [vmem:[%s954] sm:$0xff]
        %v1238 = vld [vmem:[%s954 + $0x8] sm:$0xff]
        %s1239 = sld [smem:[#allocation11 + $0x1f]]
        %v1240 = vstv %s1239
        %v1241 = vmul.f32 %v1237, %v1240
        %v1242 = vmul.f32 %v1238, %v1240
        %v1243 = vadd.f32 %v1235, %v1241
        %v1244 = vadd.f32 %v1236, %v1242
        %s1245 = sld [smem:[#allocation12 + $0x7]]
        %v1246 = vstv %s1245
        %v1247 = vadd.f32 %v1243, %v1246
        %v1248 = vadd.f32 %v1244, %v1246
        %s1249 = scalar_lea.vmem %s294, 112 [#allocation14]
        %1250 = vst.msk [vmem:[%s1249] sm:$0xff] %vm468, %v1247
        %1251 = vst.msk [vmem:[%s1249 + $0x8] sm:$0xff] %vm468, %v1248
        %s1252 = sand.u32 %s143, 1
        %s1253 = scalar_lea.sflag [#allocation6], %s1252
        %s1254 = sand.u32 %s143, 1
        %s1255 = smul.addr %s1254, 128
        %s1256 = scalar_lea.vmem [#allocation14], %s1255
        // Predicated region
        $region61: #{tpu_custom_call.1} parent=39 // pred_check
          %p1257 = pneg %p153
        $region62: #{tpu_custom_call.1} parent=39 // pred_check_branch
          %1259 = sbr.rel (%p1257) target = $region64
        $region63: #{tpu_custom_call.1} parent=39 // pred_region
          %s1261 = ssub.s32 2048, 2048
          %1262 = vsyncadd %s1253, %s1261
          %s1263 = smul.addr %s25, 16
          %s1264 = smul.addr %s1263, 128
          %s1265 = scalar_lea.hbm %s5, %s1264
          %s1266 = sshll.u32 %s1256, 4
          %s1267 = int_to_ptr.vmem [resolvable:$true] %s1266
          %1272 = dma.vmem_to_hbm [thread:$0]  %s1267, 2048, %s1265, %s1253, 128, 128, 8
        $region64: #{tpu_custom_call.1} parent=39 // pred_fallthru
          _
      $region40: #{tpu_custom_call.1} parent=5 // pred_fallthru
        _
      %p1273 = scmp.le.s32.totalorder 2, %s20
      // Predicated region
      $region65: #{tpu_custom_call.1} parent=5 // pred_check
        %p1274 = pneg %p1273
      $region66: #{tpu_custom_call.1} parent=5 // pred_check_branch
        %1276 = sbr.rel (%p1274) target = $region68
      $region67: #{tpu_custom_call.1} parent=5 // pred_region
        %s1277 = ssub.s32 %s20, 2
        // Predicated region
        $region69: #{tpu_custom_call.1} parent=67 // pred_check
          %p1278 = pneg %p159
        $region70: #{tpu_custom_call.1} parent=67 // pred_check_branch
          %1280 = sbr.rel (%p1278) target = $region72
        $region71: #{tpu_custom_call.1} parent=67 // pred_region
          %s1281 = sand.u32 %s144, 1
          %s1282 = scalar_lea.sflag [#allocation6], %s1281
          %s1283 = sand.u32 %s144, 1
          %s1284 = smul.addr %s1283, 128
          %s1285 = scalar_lea.vmem [#allocation14], %s1284
          %1286 = dma.done %s1282, 2048
        $region72: #{tpu_custom_call.1} parent=67 // pred_fallthru
          _
      $region68: #{tpu_custom_call.1} parent=5 // pred_fallthru
        _
    $region6: #{tpu_custom_call.1} parent=1 // loop_footer
      %s24 = sadd.s32 1, %s20
    $region7: #{tpu_custom_call.1} parent=1 // loop_footer_branch
      %19 = sbr.rel target = $region3
    $region8: #{tpu_custom_call.1} parent=1 // loop_exit
      _
    %1287 = vsyncpa [#allocation5], 1
    %s1288 = scalar_lea.sflag [#allocation5], 1
    %1289 = vsyncpa %s1288, 1
    %1290 = vsyncpa [#allocation6], 1
    %s1291 = scalar_lea.sflag [#allocation6], 1
    %1292 = vsyncpa %s1291, 1
    %1293 = vsyncpa [#allocation7], 1
    %s1294 = scalar_lea.sflag [#allocation7], 1
    %1295 = vsyncpa %s1294, 1
    %1296 = vsyncpa [#allocation10], 1
    %1297 = vsyncpa [#allocation13], 1

</llo_original>
